<compile_context>
chip_gen: v6e
topology: v6e:2x2x1
jax: 0.10.0
libtpu: 0.0.40
codegen_flags: <defaults>
</compile_context>

<pallas_src>
import functools
import math

import jax
import jax.numpy as jnp
import numpy as np
from jax.experimental import pallas as pl
from jax.experimental.pallas import tpu as pltpu


def _round_up(x, m):
    return (x + m - 1) // m * m


# ---------------------------------------------------------------------------
# Glue: positional encoding (matches torch positional_encoding exactly)
# ---------------------------------------------------------------------------
def positional_encoding_jax(coords, L=10):
    # coords: (P, 2) float32 -> (P, 2L), interleaved [sin(2^l v0 pi), cos(2^l v1 pi)]
    l = jnp.arange(L, dtype=jnp.float32)
    scale = (2.0 ** l) * math.pi
    s = jnp.sin(scale[None, :] * coords[:, 0:1])
    c = jnp.cos(scale[None, :] * coords[:, 1:2])
    return jnp.stack([s, c], axis=-1).reshape(coords.shape[0], 2 * L)


# ---------------------------------------------------------------------------
# Pallas kernel: fused broadcast + 3-layer MLP, transposed layout
# ---------------------------------------------------------------------------
def _decoder_kernel(featT_ref, encT_ref, w1fT_ref, w2T_ref, b2_ref,
                    w3T_ref, b3_ref, o_ref, a_ref, *, tp, dout):
    # featT_ref : (C0, tn)       feature tile, samples on the lane axis
    # encT_ref  : (1, H1, tp)    layer-1 coordinate partial for this P-tile
    # w1fT_ref  : (H1, C0), w2T_ref: (H2, H1), w3T_ref: (Dout, H2)
    # b2_ref    : (H2, 1),  b3_ref: (Dout, 1)
    # o_ref     : (tp*Dout, tn)  lane-dense 2-D output block
    # a_ref     : (H1, tn)       VMEM scratch: shared W1_feat^T @ featT
    tn = o_ref.shape[1]

    # New N tile (j == 0): recompute the coordinate-independent layer-1 part.
    @pl.when(pl.program_id(1) == 0)
    def _():
        a_ref[...] = jnp.dot(w1fT_ref[...], featT_ref[...],
                             preferred_element_type=jnp.float32)

    a = a_ref[...]                                           # (H1, tn)
    w2T = w2T_ref[...]
    w3T = w3T_ref[...]
    # Hoisted lane-broadcasts (JAX does not CSE broadcast_in_dim in the loop).
    b2_b = jnp.broadcast_to(b2_ref[...], (w2T.shape[0], tn))  # (H2, tn)
    b3_b = jnp.broadcast_to(b3_ref[...], (w3T.shape[0], tn))  # (Dout, tn)
    enc_blk = encT_ref[0]                                     # (H1, tp)

    # Fully unrolled static loop over the tp coordinates of this P-tile:
    # all slices (enc column, output rows) are static.
    for p in range(tp):
        h1 = jnp.maximum(a + enc_blk[:, p:p + 1], 0.0)                          # (H1, tn)
        h2 = jnp.maximum(
            jnp.dot(w2T, h1, preferred_element_type=jnp.float32) + b2_b, 0.0)   # (H2, tn)
        out_p = jnp.dot(w3T, h2, preferred_element_type=jnp.float32) + b3_b     # (Dout, tn)
        o_ref[p * dout:(p + 1) * dout, :] = out_p.astype(o_ref.dtype)


def _vmem_block_bytes(tn, tp, C0, H1, H2, Dout):
    """Honest VMEM estimate: sublane/lane padding + double buffering."""
    fp = 4
    out_blk = 2 * _round_up(tp * Dout, 8) * tn * fp           # output block (dbl-buf)
    feat_blk = 2 * _round_up(C0, 8) * tn * fp                 # feature tile (dbl-buf)
    a_scr = _round_up(H1, 8) * tn * fp                        # shared-matmul scratch
    enc_blk = 2 * _round_up(H1, 8) * max(_round_up(tp, 128), 128) * fp
    w_blk = 2 * fp * (_round_up(H1, 8) * _round_up(C0, 128)
                      + _round_up(H2, 8) * _round_up(H1, 128)
                      + _round_up(H2, 8) * 128
                      + _round_up(Dout, 8) * _round_up(H2, 128)
                      + _round_up(Dout, 8) * 128)
    return out_blk + feat_blk + a_scr + enc_blk + w_blk


@functools.partial(jax.jit, static_argnames=("tn",))
def decode_mlp_pallas(feature, enc, w1, b1, w2, b2, w3, b3, *, tn=None):
    """Fused PatchDecoder MLP.  feature (N, C0), enc (P, 2L) -> (N, P, Dout)."""
    N, C0 = feature.shape
    P = enc.shape[0]
    H1 = w1.shape[1]
    H2 = w2.shape[1]
    Dout = w3.shape[1]

    # Split layer 1: the coordinate half is tiny (P x H1); fold b1 into it.
    enc_h1 = enc @ w1[C0:, :] + b1                            # (P, H1)

    # P tiling: single tile for small P, otherwise tiles of 16 coordinates
    # (16*Dout is always a multiple of 8, so the output block stays legal).
    tp = P if P <= 16 else 16
    Ppad = _round_up(P, tp)
    n_ptiles = Ppad // tp
    enc_pad = jnp.pad(enc_h1, ((0, Ppad - P), (0, 0)))
    encT = jnp.transpose(enc_pad.reshape(n_ptiles, tp, H1), (0, 2, 1))  # (n_ptiles, H1, tp)

    # Transposed ("lane-major") operands.
    featT = feature.T                                         # (C0, N)
    w1fT = w1[:C0, :].T                                       # (H1, C0)
    w2T = w2.T                                                # (H2, H1)
    w3T = w3.T                                                # (Dout, H2)
    b2c = b2.reshape(H2, 1)
    b3c = b3.reshape(Dout, 1)

    # Lane tile over N: 512 default (>= 85% of HBM roofline for pipelined tiles,
    # keeps the fully-materialized (H1, tn) intermediates within the 64-vreg
    # file), shrunk if the honest VMEM estimate exceeds a v7x-safe budget, then
    # capped so the parallel N axis keeps >= 2 grid steps (v7x megacore).
    if tn is None:
        budget = 24 * 1024 * 1024
        tn = 512
        while tn > 128 and _vmem_block_bytes(tn, tp, C0, H1, H2, Dout) > budget:
            tn -= 128
    tn = max(128, _round_up(tn, 128))
    tn = min(tn, max(128, _round_up(-(-N // 2), 128)))
    tn = min(tn, _round_up(N, 128))
    Npad = _round_up(N, tn)

    featT_p = jnp.pad(featT, ((0, 0), (0, Npad - N)))

    grid = (Npad // tn, n_ptiles)
    const2 = lambda i, j: (0, 0)

    kernel = functools.partial(_decoder_kernel, tp=tp, dout=Dout)
    out = pl.pallas_call(
        kernel,
        out_shape=jax.ShapeDtypeStruct((Ppad * Dout, Npad), jnp.float32),
        grid_spec=pltpu.PrefetchScalarGridSpec(
            num_scalar_prefetch=0,
            grid=grid,
            in_specs=[
                pl.BlockSpec((C0, tn), lambda i, j: (0, i)),      # feature tile (streamed)
                pl.BlockSpec((1, H1, tp), lambda i, j: (j, 0, 0)),  # enc partial (per P-tile)
                pl.BlockSpec((H1, C0), const2),                   # W1_feat^T (resident)
                pl.BlockSpec((H2, H1), const2),                   # W2^T
                pl.BlockSpec((H2, 1), const2),                    # b2
                pl.BlockSpec((Dout, H2), const2),                 # W3^T
                pl.BlockSpec((Dout, 1), const2),                  # b3
            ],
            out_specs=pl.BlockSpec((tp * Dout, tn), lambda i, j: (j, i)),
            scratch_shapes=[pltpu.VMEM((H1, tn), jnp.float32)],
        ),
        compiler_params=pltpu.CompilerParams(
            dimension_semantics=("parallel", "arbitrary"),
            vmem_limit_bytes=32 * 1024 * 1024),
    )(featT_p, encT, w1fT, w2T, b2c, w3T, b3c)

    # (Ppad*Dout, Npad) -> (N, P, Dout).  The kernel's native layout is
    # (P, Dout, N) (samples lane-dense); the final transpose stays in XLA and
    # now reads unpadded data (Dout rows, not 8).
    out = out.reshape(Ppad, Dout, Npad)[:P, :, :N]
    return jnp.transpose(out, (2, 0, 1))


# ---------------------------------------------------------------------------
# Module wrapper
# ---------------------------------------------------------------------------
class PatchDecoderNerf2D:
    def __init__(self, key, channel=(32, 3), L=10):
        self.channel = channel
        self.L = L
        din = channel[0] + 2 * L                       # 32 + 20 = 52
        dims = [(din, 32), (32, 16), (16, channel[1])]
        keys = jax.random.split(key, 2 * len(dims))
        self.params = []
        for i, (fan_in, fan_out) in enumerate(dims):
            bound = 1.0 / math.sqrt(fan_in)            # torch nn.Linear init scale
            w = jax.random.uniform(keys[2 * i], (fan_in, fan_out),
                                   minval=-bound, maxval=bound, dtype=jnp.float32)
            b = jax.random.uniform(keys[2 * i + 1], (1, fan_out),
                                   minval=-bound, maxval=bound, dtype=jnp.float32)
            self.params += [w, b]

    def __call__(self, feature, coordinates_v, tn=None):
        # feature: (N, channel[0]); coordinates_v: (P, 2) -> (N, P, channel[1])
        enc = positional_encoding_jax(coordinates_v, L=self.L)
        return decode_mlp_pallas(feature, enc, *self.params, tn=tn)

    # pure-JAX reference (mirrors the torch forward exactly)
    def reference(self, feature, coordinates_v):
        N = feature.shape[0]
        P = coordinates_v.shape[0]
        enc = positional_encoding_jax(coordinates_v, L=self.L)
        feat_b = jnp.broadcast_to(feature[:, None, :], (N, P, feature.shape[1]))
        enc_b = jnp.broadcast_to(enc[None, :, :], (N, P, enc.shape[1]))
        x = jnp.concatenate([feat_b, enc_b], axis=-1).reshape(N * P, -1)
        w1, b1, w2, b2, w3, b3 = self.params
        h1 = jnp.maximum(x @ w1 + b1, 0.0)
        h2 = jnp.maximum(h1 @ w2 + b2, 0.0)
        return (h2 @ w3 + b3).reshape(N, P, self.channel[1])


if __name__ == "__main__":
    key = jax.random.PRNGKey(0)
    k_feat, k_coord, k_param, k_feat2, k_coord2 = jax.random.split(key, 5)

    model = PatchDecoderNerf2D(k_param, channel=(32, 3), L=10)

    # Small shapes consistent with the module: N latent codes, P 2-D coordinates.
    N, P = 2, 8
    feature = jax.random.normal(k_feat, (N, 32), dtype=jnp.float32)
    coords = jax.random.uniform(k_coord, (P, 2), dtype=jnp.float32)

    out = jax.block_until_ready(model(feature, coords))
    ref = jax.block_until_ready(model.reference(feature, coords))
    np.testing.assert_allclose(np.asarray(out), np.asarray(ref), rtol=2e-5, atol=2e-5)
    assert out.shape == (N, P, 3)

    # Multi-tile / padded case: N not a multiple of the tile, P not a multiple of 8,
    # plus a case that exercises P-tiling (P > 16).
    N2, P2 = 160, 5
    feature2 = jax.random.normal(k_feat2, (N2, 32), dtype=jnp.float32)
    coords2 = jax.random.uniform(k_coord2, (P2, 2), dtype=jnp.float32)
    out2 = jax.block_until_ready(model(feature2, coords2, tn=128))
    ref2 = jax.block_until_ready(model.reference(feature2, coords2))
    np.testing.assert_allclose(np.asarray(out2), np.asarray(ref2), rtol=2e-5, atol=2e-5)
    assert out2.shape == (N2, P2, 3)

    N3, P3 = 300, 21
    feature3 = jax.random.normal(k_feat, (N3, 32), dtype=jnp.float32)
    coords3 = jax.random.uniform(k_coord2, (P3, 2), dtype=jnp.float32)
    out3 = jax.block_until_ready(model(feature3, coords3))
    ref3 = jax.block_until_ready(model.reference(feature3, coords3))
    np.testing.assert_allclose(np.asarray(out3), np.asarray(ref3), rtol=2e-5, atol=2e-5)
    assert out3.shape == (N3, P3, 3)

    print("KERNEL_OK")
</pallas_src>

<mosaic_0001>
module attributes {stable_mosaic.version = 11 : i64} {
  func.func @_decoder_kernel(%arg0: i32, %arg1: i32, %arg2: memref<32x128xf32, #tpu.memory_space<vmem>>, %arg3: memref<1x32x8xf32, #tpu.memory_space<vmem>>, %arg4: memref<32x32xf32, #tpu.memory_space<vmem>>, %arg5: memref<16x32xf32, #tpu.memory_space<vmem>>, %arg6: memref<16x1xf32, #tpu.memory_space<vmem>>, %arg7: memref<3x16xf32, #tpu.memory_space<vmem>>, %arg8: memref<3x1xf32, #tpu.memory_space<vmem>>, %arg9: memref<24x128xf32, #tpu.memory_space<vmem>>, %arg10: memref<32x128xf32, #tpu.memory_space<vmem>>) attributes {dimension_semantics = [#tpu.dimension_semantics<parallel>, #tpu.dimension_semantics<arbitrary>], iteration_bounds = array<i64: 1, 1>, scalar_prefetch = 0 : i64, scratch_operands = 1 : i64, tpu.core_type = #tpu.core_type<tc>, window_params = [{transform_indices = @transform_0, window_bounds = array<i64: 32, 128>}, {transform_indices = @transform_1, window_bounds = array<i64: 1, 32, 8>}, {pipeline_mode = #tpu.pipeline_mode<synchronous>, transform_indices = @transform_2, window_bounds = array<i64: 32, 32>}, {pipeline_mode = #tpu.pipeline_mode<synchronous>, transform_indices = @transform_3, window_bounds = array<i64: 16, 32>}, {pipeline_mode = #tpu.pipeline_mode<synchronous>, transform_indices = @transform_4, window_bounds = array<i64: 16, 1>}, {pipeline_mode = #tpu.pipeline_mode<synchronous>, transform_indices = @transform_5, window_bounds = array<i64: 3, 16>}, {pipeline_mode = #tpu.pipeline_mode<synchronous>, transform_indices = @transform_6, window_bounds = array<i64: 3, 1>}, {transform_indices = @transform_7, window_bounds = array<i64: 24, 128>}]} {
    %c0_i32 = arith.constant 0 : i32
    %0 = arith.cmpi eq, %arg1, %c0_i32 : i32
    %1 = arith.extui %0 : i1 to i32
    %c0_i32_0 = arith.constant 0 : i32
    %2 = arith.cmpi ne, %1, %c0_i32_0 : i32
    scf.if %2 {
      %c0_53 = arith.constant 0 : index
      %c0_54 = arith.constant 0 : index
      %110 = vector.load %arg4[%c0_53, %c0_54] : memref<32x32xf32, #tpu.memory_space<vmem>>, vector<32x32xf32>
      %c0_55 = arith.constant 0 : index
      %c0_56 = arith.constant 0 : index
      %111 = vector.load %arg2[%c0_55, %c0_56] : memref<32x128xf32, #tpu.memory_space<vmem>>, vector<32x128xf32>
      %cst_57 = arith.constant dense<0.000000e+00> : vector<32x128xf32>
      %112 = tpu.matmul %110, %111, %cst_57 {dimension_numbers = #tpu.dot_dimension_numbers<[1], [0], [0], [1], [0, 0, 1, 1], [], []>} : vector<32x32xf32>, vector<32x128xf32>, vector<32x128xf32> -> vector<32x128xf32>
      %c0_58 = arith.constant 0 : index
      %c0_59 = arith.constant 0 : index
      %113 = vector.load %arg10[%c0_58, %c0_59] : memref<32x128xf32, #tpu.memory_space<vmem>>, vector<32x128xf32>
      tpu.vector_store %arg10[%c0_58, %c0_59], %112 {strides = array<i32>} : memref<32x128xf32, #tpu.memory_space<vmem>>, vector<32x128xf32>,
    } else {
    }
    %c0 = arith.constant 0 : index
    %c0_1 = arith.constant 0 : index
    %3 = vector.load %arg10[%c0, %c0_1] : memref<32x128xf32, #tpu.memory_space<vmem>>, vector<32x128xf32>
    %c0_2 = arith.constant 0 : index
    %c0_3 = arith.constant 0 : index
    %4 = vector.load %arg5[%c0_2, %c0_3] : memref<16x32xf32, #tpu.memory_space<vmem>>, vector<16x32xf32>
    %c0_4 = arith.constant 0 : index
    %c0_5 = arith.constant 0 : index
    %5 = vector.load %arg7[%c0_4, %c0_5] : memref<3x16xf32, #tpu.memory_space<vmem>>, vector<3x16xf32>
    %c0_6 = arith.constant 0 : index
    %c0_7 = arith.constant 0 : index
    %6 = vector.load %arg6[%c0_6, %c0_7] : memref<16x1xf32, #tpu.memory_space<vmem>>, vector<16x1xf32>
    %7 = vector.shape_cast %6 : vector<16x1xf32> to vector<16x1xf32>
    %8 = vector.broadcast %7 : vector<16x1xf32> to vector<16x128xf32>
    %c0_8 = arith.constant 0 : index
    %c0_9 = arith.constant 0 : index
    %9 = vector.load %arg8[%c0_8, %c0_9] : memref<3x1xf32, #tpu.memory_space<vmem>>, vector<3x1xf32>
    %10 = vector.shape_cast %9 : vector<3x1xf32> to vector<3x1xf32>
    %11 = vector.broadcast %10 : vector<3x1xf32> to vector<3x128xf32>
    %c0_10 = arith.constant 0 : index
    %c0_11 = arith.constant 0 : index
    %c0_12 = arith.constant 0 : index
    %12 = vector.load %arg3[%c0_10, %c0_11, %c0_12] : memref<1x32x8xf32, #tpu.memory_space<vmem>>, vector<1x32x8xf32>
    %13 = vector.shape_cast %12 : vector<1x32x8xf32> to vector<32x8xf32>
    %14 = vector.extract_strided_slice %13 {offsets = [0, 0], sizes = [32, 1], strides = [1, 1]} : vector<32x8xf32> to vector<32x1xf32>
    %15 = vector.broadcast %14 : vector<32x1xf32> to vector<32x128xf32>
    %16 = arith.addf %3, %15 : vector<32x128xf32>
    %cst = arith.constant 0.000000e+00 : f32
    %17 = vector.broadcast %cst : f32 to vector<32x128xf32>
    %18 = arith.maximumf %16, %17 : vector<32x128xf32>
    %cst_13 = arith.constant dense<0.000000e+00> : vector<16x128xf32>
    %19 = tpu.matmul %4, %18, %cst_13 {dimension_numbers = #tpu.dot_dimension_numbers<[1], [0], [0], [1], [0, 0, 1, 1], [], []>} : vector<16x32xf32>, vector<32x128xf32>, vector<16x128xf32> -> vector<16x128xf32>
    %20 = arith.addf %19, %8 : vector<16x128xf32>
    %cst_14 = arith.constant 0.000000e+00 : f32
    %21 = vector.broadcast %cst_14 : f32 to vector<16x128xf32>
    %22 = arith.maximumf %20, %21 : vector<16x128xf32>
    %cst_15 = arith.constant dense<0.000000e+00> : vector<3x128xf32>
    %23 = tpu.matmul %5, %22, %cst_15 {dimension_numbers = #tpu.dot_dimension_numbers<[1], [0], [0], [1], [0, 0, 1, 1], [], []>} : vector<3x16xf32>, vector<16x128xf32>, vector<3x128xf32> -> vector<3x128xf32>
    %24 = arith.addf %23, %11 : vector<3x128xf32>
    %c0_16 = arith.constant 0 : index
    %c0_17 = arith.constant 0 : index
    %25 = vector.load %arg9[%c0_16, %c0_17] : memref<24x128xf32, #tpu.memory_space<vmem>>, vector<3x128xf32>
    tpu.vector_store %arg9[%c0_16, %c0_17], %24 {strides = array<i32>} : memref<24x128xf32, #tpu.memory_space<vmem>>, vector<3x128xf32>,
    %26 = vector.extract_strided_slice %13 {offsets = [0, 1], sizes = [32, 1], strides = [1, 1]} : vector<32x8xf32> to vector<32x1xf32>
    %27 = vector.broadcast %26 : vector<32x1xf32> to vector<32x128xf32>
    %28 = arith.addf %3, %27 : vector<32x128xf32>
    %cst_18 = arith.constant 0.000000e+00 : f32
    %29 = vector.broadcast %cst_18 : f32 to vector<32x128xf32>
    %30 = arith.maximumf %28, %29 : vector<32x128xf32>
    %cst_19 = arith.constant dense<0.000000e+00> : vector<16x128xf32>
    %31 = tpu.matmul %4, %30, %cst_19 {dimension_numbers = #tpu.dot_dimension_numbers<[1], [0], [0], [1], [0, 0, 1, 1], [], []>} : vector<16x32xf32>, vector<32x128xf32>, vector<16x128xf32> -> vector<16x128xf32>
    %32 = arith.addf %31, %8 : vector<16x128xf32>
    %cst_20 = arith.constant 0.000000e+00 : f32
    %33 = vector.broadcast %cst_20 : f32 to vector<16x128xf32>
    %34 = arith.maximumf %32, %33 : vector<16x128xf32>
    %cst_21 = arith.constant dense<0.000000e+00> : vector<3x128xf32>
    %35 = tpu.matmul %5, %34, %cst_21 {dimension_numbers = #tpu.dot_dimension_numbers<[1], [0], [0], [1], [0, 0, 1, 1], [], []>} : vector<3x16xf32>, vector<16x128xf32>, vector<3x128xf32> -> vector<3x128xf32>
    %36 = arith.addf %35, %11 : vector<3x128xf32>
    %c3 = arith.constant 3 : index
    %c0_22 = arith.constant 0 : index
    %37 = vector.load %arg9[%c3, %c0_22] : memref<24x128xf32, #tpu.memory_space<vmem>>, vector<3x128xf32>
    tpu.vector_store %arg9[%c3, %c0_22], %36 {strides = array<i32>} : memref<24x128xf32, #tpu.memory_space<vmem>>, vector<3x128xf32>,
    %38 = vector.extract_strided_slice %13 {offsets = [0, 2], sizes = [32, 1], strides = [1, 1]} : vector<32x8xf32> to vector<32x1xf32>
    %39 = vector.broadcast %38 : vector<32x1xf32> to vector<32x128xf32>
    %40 = arith.addf %3, %39 : vector<32x128xf32>
    %cst_23 = arith.constant 0.000000e+00 : f32
    %41 = vector.broadcast %cst_23 : f32 to vector<32x128xf32>
    %42 = arith.maximumf %40, %41 : vector<32x128xf32>
    %cst_24 = arith.constant dense<0.000000e+00> : vector<16x128xf32>
    %43 = tpu.matmul %4, %42, %cst_24 {dimension_numbers = #tpu.dot_dimension_numbers<[1], [0], [0], [1], [0, 0, 1, 1], [], []>} : vector<16x32xf32>, vector<32x128xf32>, vector<16x128xf32> -> vector<16x128xf32>
    %44 = arith.addf %43, %8 : vector<16x128xf32>
    %cst_25 = arith.constant 0.000000e+00 : f32
    %45 = vector.broadcast %cst_25 : f32 to vector<16x128xf32>
    %46 = arith.maximumf %44, %45 : vector<16x128xf32>
    %cst_26 = arith.constant dense<0.000000e+00> : vector<3x128xf32>
    %47 = tpu.matmul %5, %46, %cst_26 {dimension_numbers = #tpu.dot_dimension_numbers<[1], [0], [0], [1], [0, 0, 1, 1], [], []>} : vector<3x16xf32>, vector<16x128xf32>, vector<3x128xf32> -> vector<3x128xf32>
    %48 = arith.addf %47, %11 : vector<3x128xf32>
    %c6 = arith.constant 6 : index
    %c0_27 = arith.constant 0 : index
    %49 = vector.load %arg9[%c6, %c0_27] : memref<24x128xf32, #tpu.memory_space<vmem>>, vector<3x128xf32>
    tpu.vector_store %arg9[%c6, %c0_27], %48 {strides = array<i32>} : memref<24x128xf32, #tpu.memory_space<vmem>>, vector<3x128xf32>,
    %50 = vector.extract_strided_slice %13 {offsets = [0, 3], sizes = [32, 1], strides = [1, 1]} : vector<32x8xf32> to vector<32x1xf32>
    %51 = vector.broadcast %50 : vector<32x1xf32> to vector<32x128xf32>
    %52 = arith.addf %3, %51 : vector<32x128xf32>
    %cst_28 = arith.constant 0.000000e+00 : f32
    %53 = vector.broadcast %cst_28 : f32 to vector<32x128xf32>
    %54 = arith.maximumf %52, %53 : vector<32x128xf32>
    %cst_29 = arith.constant dense<0.000000e+00> : vector<16x128xf32>
    %55 = tpu.matmul %4, %54, %cst_29 {dimension_numbers = #tpu.dot_dimension_numbers<[1], [0], [0], [1], [0, 0, 1, 1], [], []>} : vector<16x32xf32>, vector<32x128xf32>, vector<16x128xf32> -> vector<16x128xf32>
    %56 = arith.addf %55, %8 : vector<16x128xf32>
    %cst_30 = arith.constant 0.000000e+00 : f32
    %57 = vector.broadcast %cst_30 : f32 to vector<16x128xf32>
    %58 = arith.maximumf %56, %57 : vector<16x128xf32>
    %cst_31 = arith.constant dense<0.000000e+00> : vector<3x128xf32>
    %59 = tpu.matmul %5, %58, %cst_31 {dimension_numbers = #tpu.dot_dimension_numbers<[1], [0], [0], [1], [0, 0, 1, 1], [], []>} : vector<3x16xf32>, vector<16x128xf32>, vector<3x128xf32> -> vector<3x128xf32>
    %60 = arith.addf %59, %11 : vector<3x128xf32>
    %c9 = arith.constant 9 : index
    %c0_32 = arith.constant 0 : index
    %61 = vector.load %arg9[%c9, %c0_32] : memref<24x128xf32, #tpu.memory_space<vmem>>, vector<3x128xf32>
    tpu.vector_store %arg9[%c9, %c0_32], %60 {strides = array<i32>} : memref<24x128xf32, #tpu.memory_space<vmem>>, vector<3x128xf32>,
    %62 = vector.extract_strided_slice %13 {offsets = [0, 4], sizes = [32, 1], strides = [1, 1]} : vector<32x8xf32> to vector<32x1xf32>
    %63 = vector.broadcast %62 : vector<32x1xf32> to vector<32x128xf32>
    %64 = arith.addf %3, %63 : vector<32x128xf32>
    %cst_33 = arith.constant 0.000000e+00 : f32
    %65 = vector.broadcast %cst_33 : f32 to vector<32x128xf32>
    %66 = arith.maximumf %64, %65 : vector<32x128xf32>
    %cst_34 = arith.constant dense<0.000000e+00> : vector<16x128xf32>
    %67 = tpu.matmul %4, %66, %cst_34 {dimension_numbers = #tpu.dot_dimension_numbers<[1], [0], [0], [1], [0, 0, 1, 1], [], []>} : vector<16x32xf32>, vector<32x128xf32>, vector<16x128xf32> -> vector<16x128xf32>
    %68 = arith.addf %67, %8 : vector<16x128xf32>
    %cst_35 = arith.constant 0.000000e+00 : f32
    %69 = vector.broadcast %cst_35 : f32 to vector<16x128xf32>
    %70 = arith.maximumf %68, %69 : vector<16x128xf32>
    %cst_36 = arith.constant dense<0.000000e+00> : vector<3x128xf32>
    %71 = tpu.matmul %5, %70, %cst_36 {dimension_numbers = #tpu.dot_dimension_numbers<[1], [0], [0], [1], [0, 0, 1, 1], [], []>} : vector<3x16xf32>, vector<16x128xf32>, vector<3x128xf32> -> vector<3x128xf32>
    %72 = arith.addf %71, %11 : vector<3x128xf32>
    %c12 = arith.constant 12 : index
    %c0_37 = arith.constant 0 : index
    %73 = vector.load %arg9[%c12, %c0_37] : memref<24x128xf32, #tpu.memory_space<vmem>>, vector<3x128xf32>
    tpu.vector_store %arg9[%c12, %c0_37], %72 {strides = array<i32>} : memref<24x128xf32, #tpu.memory_space<vmem>>, vector<3x128xf32>,
    %74 = vector.extract_strided_slice %13 {offsets = [0, 5], sizes = [32, 1], strides = [1, 1]} : vector<32x8xf32> to vector<32x1xf32>
    %75 = vector.broadcast %74 : vector<32x1xf32> to vector<32x128xf32>
    %76 = arith.addf %3, %75 : vector<32x128xf32>
    %cst_38 = arith.constant 0.000000e+00 : f32
    %77 = vector.broadcast %cst_38 : f32 to vector<32x128xf32>
    %78 = arith.maximumf %76, %77 : vector<32x128xf32>
    %cst_39 = arith.constant dense<0.000000e+00> : vector<16x128xf32>
    %79 = tpu.matmul %4, %78, %cst_39 {dimension_numbers = #tpu.dot_dimension_numbers<[1], [0], [0], [1], [0, 0, 1, 1], [], []>} : vector<16x32xf32>, vector<32x128xf32>, vector<16x128xf32> -> vector<16x128xf32>
    %80 = arith.addf %79, %8 : vector<16x128xf32>
    %cst_40 = arith.constant 0.000000e+00 : f32
    %81 = vector.broadcast %cst_40 : f32 to vector<16x128xf32>
    %82 = arith.maximumf %80, %81 : vector<16x128xf32>
    %cst_41 = arith.constant dense<0.000000e+00> : vector<3x128xf32>
    %83 = tpu.matmul %5, %82, %cst_41 {dimension_numbers = #tpu.dot_dimension_numbers<[1], [0], [0], [1], [0, 0, 1, 1], [], []>} : vector<3x16xf32>, vector<16x128xf32>, vector<3x128xf32> -> vector<3x128xf32>
    %84 = arith.addf %83, %11 : vector<3x128xf32>
    %c15 = arith.constant 15 : index
    %c0_42 = arith.constant 0 : index
    %85 = vector.load %arg9[%c15, %c0_42] : memref<24x128xf32, #tpu.memory_space<vmem>>, vector<3x128xf32>
    tpu.vector_store %arg9[%c15, %c0_42], %84 {strides = array<i32>} : memref<24x128xf32, #tpu.memory_space<vmem>>, vector<3x128xf32>,
    %86 = vector.extract_strided_slice %13 {offsets = [0, 6], sizes = [32, 1], strides = [1, 1]} : vector<32x8xf32> to vector<32x1xf32>
    %87 = vector.broadcast %86 : vector<32x1xf32> to vector<32x128xf32>
    %88 = arith.addf %3, %87 : vector<32x128xf32>
    %cst_43 = arith.constant 0.000000e+00 : f32
    %89 = vector.broadcast %cst_43 : f32 to vector<32x128xf32>
    %90 = arith.maximumf %88, %89 : vector<32x128xf32>
    %cst_44 = arith.constant dense<0.000000e+00> : vector<16x128xf32>
    %91 = tpu.matmul %4, %90, %cst_44 {dimension_numbers = #tpu.dot_dimension_numbers<[1], [0], [0], [1], [0, 0, 1, 1], [], []>} : vector<16x32xf32>, vector<32x128xf32>, vector<16x128xf32> -> vector<16x128xf32>
    %92 = arith.addf %91, %8 : vector<16x128xf32>
    %cst_45 = arith.constant 0.000000e+00 : f32
    %93 = vector.broadcast %cst_45 : f32 to vector<16x128xf32>
    %94 = arith.maximumf %92, %93 : vector<16x128xf32>
    %cst_46 = arith.constant dense<0.000000e+00> : vector<3x128xf32>
    %95 = tpu.matmul %5, %94, %cst_46 {dimension_numbers = #tpu.dot_dimension_numbers<[1], [0], [0], [1], [0, 0, 1, 1], [], []>} : vector<3x16xf32>, vector<16x128xf32>, vector<3x128xf32> -> vector<3x128xf32>
    %96 = arith.addf %95, %11 : vector<3x128xf32>
    %c18 = arith.constant 18 : index
    %c0_47 = arith.constant 0 : index
    %97 = vector.load %arg9[%c18, %c0_47] : memref<24x128xf32, #tpu.memory_space<vmem>>, vector<3x128xf32>
    tpu.vector_store %arg9[%c18, %c0_47], %96 {strides = array<i32>} : memref<24x128xf32, #tpu.memory_space<vmem>>, vector<3x128xf32>,
    %98 = vector.extract_strided_slice %13 {offsets = [0, 7], sizes = [32, 1], strides = [1, 1]} : vector<32x8xf32> to vector<32x1xf32>
    %99 = vector.broadcast %98 : vector<32x1xf32> to vector<32x128xf32>
    %100 = arith.addf %3, %99 : vector<32x128xf32>
    %cst_48 = arith.constant 0.000000e+00 : f32
    %101 = vector.broadcast %cst_48 : f32 to vector<32x128xf32>
    %102 = arith.maximumf %100, %101 : vector<32x128xf32>
    %cst_49 = arith.constant dense<0.000000e+00> : vector<16x128xf32>
    %103 = tpu.matmul %4, %102, %cst_49 {dimension_numbers = #tpu.dot_dimension_numbers<[1], [0], [0], [1], [0, 0, 1, 1], [], []>} : vector<16x32xf32>, vector<32x128xf32>, vector<16x128xf32> -> vector<16x128xf32>
    %104 = arith.addf %103, %8 : vector<16x128xf32>
    %cst_50 = arith.constant 0.000000e+00 : f32
    %105 = vector.broadcast %cst_50 : f32 to vector<16x128xf32>
    %106 = arith.maximumf %104, %105 : vector<16x128xf32>
    %cst_51 = arith.constant dense<0.000000e+00> : vector<3x128xf32>
    %107 = tpu.matmul %5, %106, %cst_51 {dimension_numbers = #tpu.dot_dimension_numbers<[1], [0], [0], [1], [0, 0, 1, 1], [], []>} : vector<3x16xf32>, vector<16x128xf32>, vector<3x128xf32> -> vector<3x128xf32>
    %108 = arith.addf %107, %11 : vector<3x128xf32>
    %c21 = arith.constant 21 : index
    %c0_52 = arith.constant 0 : index
    %109 = vector.load %arg9[%c21, %c0_52] : memref<24x128xf32, #tpu.memory_space<vmem>>, vector<3x128xf32>
    tpu.vector_store %arg9[%c21, %c0_52], %108 {strides = array<i32>} : memref<24x128xf32, #tpu.memory_space<vmem>>, vector<3x128xf32>,
    return
  }
  func.func @transform_0(%arg0: i32, %arg1: i32) -> (i32, i32) {
    %c0_i32 = arith.constant 0 : i32
    %c0_i32_0 = arith.constant 0 : i32
    return %c0_i32, %arg0 : i32, i32
  }
  func.func @transform_1(%arg0: i32, %arg1: i32) -> (i32, i32, i32) {
    %c0_i32 = arith.constant 0 : i32
    %c0_i32_0 = arith.constant 0 : i32
    %c0_i32_1 = arith.constant 0 : i32
    return %arg1, %c0_i32, %c0_i32_0 : i32, i32, i32
  }
  func.func @transform_2(%arg0: i32, %arg1: i32) -> (i32, i32) {
    %c0_i32 = arith.constant 0 : i32
    %c0_i32_0 = arith.constant 0 : i32
    %c0_i32_1 = arith.constant 0 : i32
    return %c0_i32, %c0_i32_0 : i32, i32
  }
  func.func @transform_3(%arg0: i32, %arg1: i32) -> (i32, i32) {
    %c0_i32 = arith.constant 0 : i32
    %c0_i32_0 = arith.constant 0 : i32
    %c0_i32_1 = arith.constant 0 : i32
    return %c0_i32, %c0_i32_0 : i32, i32
  }
  func.func @transform_4(%arg0: i32, %arg1: i32) -> (i32, i32) {
    %c0_i32 = arith.constant 0 : i32
    %c0_i32_0 = arith.constant 0 : i32
    %c0_i32_1 = arith.constant 0 : i32
    return %c0_i32, %c0_i32_0 : i32, i32
  }
  func.func @transform_5(%arg0: i32, %arg1: i32) -> (i32, i32) {
    %c0_i32 = arith.constant 0 : i32
    %c0_i32_0 = arith.constant 0 : i32
    %c0_i32_1 = arith.constant 0 : i32
    return %c0_i32, %c0_i32_0 : i32, i32
  }
  func.func @transform_6(%arg0: i32, %arg1: i32) -> (i32, i32) {
    %c0_i32 = arith.constant 0 : i32
    %c0_i32_0 = arith.constant 0 : i32
    %c0_i32_1 = arith.constant 0 : i32
    return %c0_i32, %c0_i32_0 : i32, i32
  }
  func.func @transform_7(%arg0: i32, %arg1: i32) -> (i32, i32) {
    %c0_i32 = arith.constant 0 : i32
    return %arg1, %arg0 : i32, i32
  }
}

</mosaic_0001>

<llo_original>
// kernel: decode_mlp_pallas.1
$region0: #{decode_mlp_pallas.1}
  #allocation0 [shape = 'u32[]', space=smem, size = 0x4, offset = 0x4, fixed_abs, tag = 'smem constant byte address 0x4 - core index']
  #allocation1 [shape = 'u32[144,128]{1,0:T(1,128)}', space=vmem, size = 0x12000, scoped, tag = 'internal scratch']
  #allocation2 [shape = 'f32[32,128]{1,0:T(8,128)}', space=vmem, size = 0x4000, scoped, tag = 'scratch operand']
  %s0 = inlined_call_operand.vmem [shape: f32[32,128], index: 0, kind: input, shape index: {}]
  %s1 = inlined_call_operand.vmem [shape: f32[1,32,8], index: 1, kind: input, shape index: {}]
  %s2 = inlined_call_operand.vmem [shape: f32[32,32], index: 2, kind: input, shape index: {}]
  %s3 = inlined_call_operand.vmem [shape: f32[16,32], index: 3, kind: input, shape index: {}]
  %s4 = inlined_call_operand.vmem [shape: f32[16,1], index: 4, kind: input, shape index: {}]
  %s5 = inlined_call_operand.vmem [shape: f32[3,16], index: 5, kind: input, shape index: {}]
  %s6 = inlined_call_operand.vmem [shape: f32[3,1], index: 6, kind: input, shape index: {}]
  %s7 = inlined_call_operand.vmem [shape: f32[24,128], index: 7, kind: output, shape index: {}]
  %s8 = sld [smem:[#allocation0]]
  $region42: #{decode_mlp_pallas.1} parent=0
    _
  %s10 = ssub.s32 1, %s8
  %s11 = scalar_select 0, %s10, %s8
  // Predicated region
  $region2: #{decode_mlp_pallas.1} parent=0 // pred_check
    _
  $region3: #{decode_mlp_pallas.1} parent=0 // pred_check_branch
    %13 = sbr.rel (0) target = $region5
  $region4: #{decode_mlp_pallas.1} parent=0 // pred_region
    _
  $region5: #{decode_mlp_pallas.1} parent=0 // pred_fallthru
    _
  // Predicated region
  $region6: #{decode_mlp_pallas.1} parent=0 // pred_check
    _
  $region7: #{decode_mlp_pallas.1} parent=0 // pred_check_branch
    %15 = sbr.rel (0) target = $region9
  $region8: #{decode_mlp_pallas.1} parent=0 // pred_region
    _
  $region9: #{decode_mlp_pallas.1} parent=0 // pred_fallthru
    _
  // Predicated region
  $region10: #{decode_mlp_pallas.1} parent=0 // pred_check
    _
  $region11: #{decode_mlp_pallas.1} parent=0 // pred_check_branch
    %17 = sbr.rel (0) target = $region13
  $region12: #{decode_mlp_pallas.1} parent=0 // pred_region
    _
  $region13: #{decode_mlp_pallas.1} parent=0 // pred_fallthru
    _
  // Predicated region
  $region14: #{decode_mlp_pallas.1} parent=0 // pred_check
    _
  $region15: #{decode_mlp_pallas.1} parent=0 // pred_check_branch
    %19 = sbr.rel (0) target = $region17
  $region16: #{decode_mlp_pallas.1} parent=0 // pred_region
    _
  $region17: #{decode_mlp_pallas.1} parent=0 // pred_fallthru
    _
  // Predicated region
  $region18: #{decode_mlp_pallas.1} parent=0 // pred_check
    _
  $region19: #{decode_mlp_pallas.1} parent=0 // pred_check_branch
    %21 = sbr.rel (0) target = $region21
  $region20: #{decode_mlp_pallas.1} parent=0 // pred_region
    _
  $region21: #{decode_mlp_pallas.1} parent=0 // pred_fallthru
    _
  // Predicated region
  $region22: #{decode_mlp_pallas.1} parent=0 // pred_check
    _
  $region23: #{decode_mlp_pallas.1} parent=0 // pred_check_branch
    %23 = sbr.rel (0) target = $region25
  $region24: #{decode_mlp_pallas.1} parent=0 // pred_region
    _
  $region25: #{decode_mlp_pallas.1} parent=0 // pred_fallthru
    _
  // Predicated region
  $region26: #{decode_mlp_pallas.1} parent=0 // pred_check
    _
  $region27: #{decode_mlp_pallas.1} parent=0 // pred_check_branch
    %25 = sbr.rel (0) target = $region29
  $region28: #{decode_mlp_pallas.1} parent=0 // pred_region
    _
  $region29: #{decode_mlp_pallas.1} parent=0 // pred_fallthru
    _
  %p26 = scmp.eq.s32.totalorder 0, 0
  // Predicated region
  $region30: #{decode_mlp_pallas.1} parent=0 // pred_check
    %p27 = pneg %p26
  $region31: #{decode_mlp_pallas.1} parent=0 // pred_check_branch
    %29 = sbr.rel (%p27) target = $region33
  $region32: #{decode_mlp_pallas.1} parent=0 // pred_region
    %v30 = vld [vmem:[%s2] sm:$0xff]
    %v31 = vld [vmem:[%s2 + $0x8] sm:$0xff]
    %v32 = vld [vmem:[%s2 + $0x10] sm:$0xff]
    %v33 = vld [vmem:[%s2 + $0x18] sm:$0xff]
    %v34 = vld [vmem:[%s0] sm:$0xff]
    %v35 = vld [vmem:[%s0 + $0x8] sm:$0xff]
    %v36 = vld [vmem:[%s0 + $0x10] sm:$0xff]
    %v37 = vld [vmem:[%s0 + $0x18] sm:$0xff]
    %vm38 = vcmask 261120
    %v40 = vsel %vm38, %v30, 0
    %v43 = vsel %vm38, %v31, 0
    %v46 = vsel %vm38, %v32, 0
    %v49 = vsel %vm38, %v33, 0
    %51 = vmatprep.subr.mxu0 0.0
    %52 = vmatpush1.msra.mxu0 0.0
    %53 = vmatprep.subr.mxu0 0.0
    %54 = vmatpush1.msra.mxu0 0.0
    %55 = vmatprep.subr.mxu0 0.0
    %56 = vmatpush1.msra.mxu0 0.0
    %57 = vmatprep.subr.mxu0 0.0
    %58 = vmatpush1.msra.mxu0 0.0
    %59 = vmatprep.subr.mxu0 0.0
    %60 = vmatpush1.msra.mxu0 0.0
    %61 = vmatprep.subr.mxu0 0.0
    %62 = vmatpush1.msra.mxu0 0.0
    %63 = vmatprep.subr.mxu0 0.0
    %64 = vmatpush1.msra.mxu0 0.0
    %65 = vmatprep.subr.mxu0 0.0
    %66 = vmatpush1.msra.mxu0 0.0
    %67 = vmatprep.subr.mxu0 0.0
    %68 = vmatpush1.msra.mxu0 0.0
    %69 = vmatprep.subr.mxu0 0.0
    %70 = vmatpush1.msra.mxu0 0.0
    %71 = vmatprep.subr.mxu0 0.0
    %72 = vmatpush1.msra.mxu0 0.0
    %73 = vmatprep.subr.mxu0 0.0
    %74 = vmatpush1.msra.mxu0 0.0
    %75 = vmatprep.subr.mxu0 0.0
    %76 = vmatpush1.msra.mxu0 %v37
    %77 = vmatprep.subr.mxu0 0.0
    %78 = vmatpush1.msra.mxu0 %v36
    %79 = vmatprep.subr.mxu0 0.0
    %80 = vmatpush1.msra.mxu0 %v35
    %81 = vmatprep.subr.mxu0 0.0
    %82 = vmatpush1.msra.mxu0 %v34
    %83 = vmatprep.subr.mxu0 0.0
    %84 = vmatpush2.msra.mxu0 0.0
    %85 = vmatprep.subr.mxu0 0.0
    %86 = vmatpush2.msra.mxu0 0.0
    %87 = vmatprep.subr.mxu0 0.0
    %88 = vmatpush2.msra.mxu0 0.0
    %89 = vmatprep.subr.mxu0 0.0
    %90 = vmatpush2.msra.mxu0 0.0
    %91 = vmatprep.subr.mxu0 0.0
    %92 = vmatpush2.msra.mxu0 0.0
    %93 = vmatprep.subr.mxu0 0.0
    %94 = vmatpush2.msra.mxu0 0.0
    %95 = vmatprep.subr.mxu0 0.0
    %96 = vmatpush2.msra.mxu0 0.0
    %97 = vmatprep.subr.mxu0 0.0
    %98 = vmatpush2.msra.mxu0 0.0
    %99 = vmatprep.subr.mxu0 0.0
    %100 = vmatpush2.msra.mxu0 0.0
    %101 = vmatprep.subr.mxu0 0.0
    %102 = vmatpush2.msra.mxu0 0.0
    %103 = vmatprep.subr.mxu0 0.0
    %104 = vmatpush2.msra.mxu0 0.0
    %105 = vmatprep.subr.mxu0 0.0
    %106 = vmatpush2.msra.mxu0 0.0
    %107 = vmatprep.subr.mxu0 0.0
    %108 = vmatpush2.msra.mxu0 0.0
    %109 = vmatprep.subr.mxu0 0.0
    %110 = vmatpush2.msra.mxu0 0.0
    %111 = vmatprep.subr.mxu0 0.0
    %112 = vmatpush2.msra.mxu0 0.0
    %113 = vmatprep.subr.mxu0 0.0
    %114 = vmatpush2.msra.mxu0 0.0
    %115 = vmatprep.mubr.f32.mxu0 0.0
    %116 = vmatmul.mubr.f32.gmra.mxu0 %v40
    %v117 = vpop.f32.mrf.mxu0
    %v118 = vadd.f32 0.0, %v117
    %v119 = vpop.f32.mrf.mxu0
    %120 = vmatprep.mubr.f32.mxu0 0.0
    %121 = vmatmul.mubr.f32.gmra.mxu0 %v43
    %v122 = vpop.f32.mrf.mxu0
    %v123 = vadd.f32 0.0, %v122
    %v124 = vpop.f32.mrf.mxu0
    %125 = vmatprep.mubr.f32.mxu0 0.0
    %126 = vmatmul.mubr.f32.gmra.mxu0 %v46
    %v127 = vpop.f32.mrf.mxu0
    %v128 = vadd.f32 0.0, %v127
    %v129 = vpop.f32.mrf.mxu0
    %130 = vmatprep.mubr.f32.mxu0 0.0
    %131 = vmatmul.mubr.f32.gmra.mxu0 %v49
    %v132 = vpop.f32.mrf.mxu0
    %v133 = vadd.f32 0.0, %v132
    %v134 = vpop.f32.mrf.mxu0
    %135 = vdwg.mxu0
    %136 = vst [vmem:[#allocation2] sm:$0xff] %v118
    %137 = vst [vmem:[#allocation2 + $0x8] sm:$0xff] %v123
    %138 = vst [vmem:[#allocation2 + $0x10] sm:$0xff] %v128
    %139 = vst [vmem:[#allocation2 + $0x18] sm:$0xff] %v133
  $region33: #{decode_mlp_pallas.1} parent=0 // pred_fallthru
    _
  %v140 = vld [vmem:[#allocation2] sm:$0xff]
  %v141 = vld [vmem:[#allocation2 + $0x8] sm:$0xff]
  %v142 = vld [vmem:[#allocation2 + $0x10] sm:$0xff]
  %v143 = vld [vmem:[#allocation2 + $0x18] sm:$0xff]
  %v144 = vld [vmem:[%s3] sm:$0xff]
  %v145 = vld [vmem:[%s3 + $0x8] sm:$0xff]
  %v146 = vld [vmem:[%s5] sm:$0x7]
  %v147 = vld [vmem:[%s4] sm:$0xff]
  %v148 = vld [vmem:[%s4 + $0x8] sm:$0xff]
  %150 = vset.pattern.permute.xlu0 0
  %151 = vperm.xlu0 %150, %v147
  %v152 = vpop.permute.xlu0 %151
  %155 = vset.pattern.permute.xlu0 0
  %156 = vperm.xlu0 %155, %v148
  %v157 = vpop.permute.xlu0 %156
  %v159 = vld [vmem:[%s6] sm:$0x7]
  %161 = vset.pattern.permute.xlu0 0
  %162 = vperm.xlu0 %161, %v159
  %v163 = vpop.permute.xlu0 %162
  %v165 = vld [vmem:[%s1] sm:$0xff]
  %v166 = vld [vmem:[%s1 + $0x8] sm:$0xff]
  %v167 = vld [vmem:[%s1 + $0x10] sm:$0xff]
  %v168 = vld [vmem:[%s1 + $0x18] sm:$0xff]
  %170 = vset.pattern.permute.xlu0 0
  %171 = vperm.xlu0 %170, %v165
  %v172 = vpop.permute.xlu0 %171
  %175 = vset.pattern.permute.xlu0 0
  %176 = vperm.xlu0 %175, %v166
  %v177 = vpop.permute.xlu0 %176
  %180 = vset.pattern.permute.xlu0 0
  %181 = vperm.xlu0 %180, %v167
  %v182 = vpop.permute.xlu0 %181
  %185 = vset.pattern.permute.xlu0 0
  %186 = vperm.xlu0 %185, %v168
  %v187 = vpop.permute.xlu0 %186
  %v189 = vadd.f32 %v140, %v172
  %v190 = vadd.f32 %v141, %v177
  %v191 = vadd.f32 %v142, %v182
  %v192 = vadd.f32 %v143, %v187
  %v193 = vmax.f32 %v189, 0.0
  %v194 = vmax.f32 %v190, 0.0
  %v195 = vmax.f32 %v191, 0.0
  %v196 = vmax.f32 %v192, 0.0
  %vm197 = vcmask 261120
  %v199 = vsel %vm197, %v144, 0
  %v202 = vsel %vm197, %v145, 0
  %204 = vmatprep.subr.mxu0 0.0
  %205 = vmatpush1.msra.mxu0 0.0
  %206 = vmatprep.subr.mxu0 0.0
  %207 = vmatpush1.msra.mxu0 0.0
  %208 = vmatprep.subr.mxu0 0.0
  %209 = vmatpush1.msra.mxu0 0.0
  %210 = vmatprep.subr.mxu0 0.0
  %211 = vmatpush1.msra.mxu0 0.0
  %212 = vmatprep.subr.mxu0 0.0
  %213 = vmatpush1.msra.mxu0 0.0
  %214 = vmatprep.subr.mxu0 0.0
  %215 = vmatpush1.msra.mxu0 0.0
  %216 = vmatprep.subr.mxu0 0.0
  %217 = vmatpush1.msra.mxu0 0.0
  %218 = vmatprep.subr.mxu0 0.0
  %219 = vmatpush1.msra.mxu0 0.0
  %220 = vmatprep.subr.mxu0 0.0
  %221 = vmatpush1.msra.mxu0 0.0
  %222 = vmatprep.subr.mxu0 0.0
  %223 = vmatpush1.msra.mxu0 0.0
  %224 = vmatprep.subr.mxu0 0.0
  %225 = vmatpush1.msra.mxu0 0.0
  %226 = vmatprep.subr.mxu0 0.0
  %227 = vmatpush1.msra.mxu0 0.0
  %228 = vmatprep.subr.mxu0 0.0
  %229 = vmatpush1.msra.mxu0 %v196
  %230 = vmatprep.subr.mxu0 0.0
  %231 = vmatpush1.msra.mxu0 %v195
  %232 = vmatprep.subr.mxu0 0.0
  %233 = vmatpush1.msra.mxu0 %v194
  %234 = vmatprep.subr.mxu0 0.0
  %235 = vmatpush1.msra.mxu0 %v193
  %236 = vmatprep.subr.mxu0 0.0
  %237 = vmatpush2.msra.mxu0 0.0
  %238 = vmatprep.subr.mxu0 0.0
  %239 = vmatpush2.msra.mxu0 0.0
  %240 = vmatprep.subr.mxu0 0.0
  %241 = vmatpush2.msra.mxu0 0.0
  %242 = vmatprep.subr.mxu0 0.0
  %243 = vmatpush2.msra.mxu0 0.0
  %244 = vmatprep.subr.mxu0 0.0
  %245 = vmatpush2.msra.mxu0 0.0
  %246 = vmatprep.subr.mxu0 0.0
  %247 = vmatpush2.msra.mxu0 0.0
  %248 = vmatprep.subr.mxu0 0.0
  %249 = vmatpush2.msra.mxu0 0.0
  %250 = vmatprep.subr.mxu0 0.0
  %251 = vmatpush2.msra.mxu0 0.0
  %252 = vmatprep.subr.mxu0 0.0
  %253 = vmatpush2.msra.mxu0 0.0
  %254 = vmatprep.subr.mxu0 0.0
  %255 = vmatpush2.msra.mxu0 0.0
  %256 = vmatprep.subr.mxu0 0.0
  %257 = vmatpush2.msra.mxu0 0.0
  %258 = vmatprep.subr.mxu0 0.0
  %259 = vmatpush2.msra.mxu0 0.0
  %260 = vmatprep.subr.mxu0 0.0
  %261 = vmatpush2.msra.mxu0 0.0
  %262 = vmatprep.subr.mxu0 0.0
  %263 = vmatpush2.msra.mxu0 0.0
  %264 = vmatprep.subr.mxu0 0.0
  %265 = vmatpush2.msra.mxu0 0.0
  %266 = vmatprep.subr.mxu0 0.0
  %267 = vmatpush2.msra.mxu0 0.0
  %268 = vmatprep.mubr.f32.mxu0 0.0
  %269 = vmatmul.mubr.f32.gmra.mxu0 %v199
  %v270 = vpop.f32.mrf.mxu0
  %v271 = vadd.f32 %v152, %v270
  %v272 = vpop.f32.mrf.mxu0
  %273 = vmatprep.mubr.f32.mxu0 0.0
  %274 = vmatmul.mubr.f32.gmra.mxu0 %v202
  %v275 = vpop.f32.mrf.mxu0
  %v276 = vadd.f32 %v157, %v275
  %v277 = vpop.f32.mrf.mxu0
  %278 = vdwg.mxu0
  %v279 = vmax.f32 %v271, 0.0
  %v280 = vmax.f32 %v276, 0.0
  %vm281 = vcmask 130048
  %v283 = vsel %vm281, %v146, 0
  %285 = vmatprep.subr.mxu0 0.0
  %286 = vmatpush1.msra.mxu0 0.0
  %287 = vmatprep.subr.mxu0 0.0
  %288 = vmatpush1.msra.mxu0 0.0
  %289 = vmatprep.subr.mxu0 0.0
  %290 = vmatpush1.msra.mxu0 0.0
  %291 = vmatprep.subr.mxu0 0.0
  %292 = vmatpush1.msra.mxu0 0.0
  %293 = vmatprep.subr.mxu0 0.0
  %294 = vmatpush1.msra.mxu0 0.0
  %295 = vmatprep.subr.mxu0 0.0
  %296 = vmatpush1.msra.mxu0 0.0
  %297 = vmatprep.subr.mxu0 0.0
  %298 = vmatpush1.msra.mxu0 0.0
  %299 = vmatprep.subr.mxu0 0.0
  %300 = vmatpush1.msra.mxu0 0.0
  %301 = vmatprep.subr.mxu0 0.0
  %302 = vmatpush1.msra.mxu0 0.0
  %303 = vmatprep.subr.mxu0 0.0
  %304 = vmatpush1.msra.mxu0 0.0
  %305 = vmatprep.subr.mxu0 0.0
  %306 = vmatpush1.msra.mxu0 0.0
  %307 = vmatprep.subr.mxu0 0.0
  %308 = vmatpush1.msra.mxu0 0.0
  %309 = vmatprep.subr.mxu0 0.0
  %310 = vmatpush1.msra.mxu0 0.0
  %311 = vmatprep.subr.mxu0 0.0
  %312 = vmatpush1.msra.mxu0 0.0
  %313 = vmatprep.subr.mxu0 0.0
  %314 = vmatpush1.msra.mxu0 %v280
  %315 = vmatprep.subr.mxu0 0.0
  %316 = vmatpush1.msra.mxu0 %v279
  %317 = vmatprep.subr.mxu0 0.0
  %318 = vmatpush2.msra.mxu0 0.0
  %319 = vmatprep.subr.mxu0 0.0
  %320 = vmatpush2.msra.mxu0 0.0
  %321 = vmatprep.subr.mxu0 0.0
  %322 = vmatpush2.msra.mxu0 0.0
  %323 = vmatprep.subr.mxu0 0.0
  %324 = vmatpush2.msra.mxu0 0.0
  %325 = vmatprep.subr.mxu0 0.0
  %326 = vmatpush2.msra.mxu0 0.0
  %327 = vmatprep.subr.mxu0 0.0
  %328 = vmatpush2.msra.mxu0 0.0
  %329 = vmatprep.subr.mxu0 0.0
  %330 = vmatpush2.msra.mxu0 0.0
  %331 = vmatprep.subr.mxu0 0.0
  %332 = vmatpush2.msra.mxu0 0.0
  %333 = vmatprep.subr.mxu0 0.0
  %334 = vmatpush2.msra.mxu0 0.0
  %335 = vmatprep.subr.mxu0 0.0
  %336 = vmatpush2.msra.mxu0 0.0
  %337 = vmatprep.subr.mxu0 0.0
  %338 = vmatpush2.msra.mxu0 0.0
  %339 = vmatprep.subr.mxu0 0.0
  %340 = vmatpush2.msra.mxu0 0.0
  %341 = vmatprep.subr.mxu0 0.0
  %342 = vmatpush2.msra.mxu0 0.0
  %343 = vmatprep.subr.mxu0 0.0
  %344 = vmatpush2.msra.mxu0 0.0
  %345 = vmatprep.subr.mxu0 0.0
  %346 = vmatpush2.msra.mxu0 0.0
  %347 = vmatprep.subr.mxu0 0.0
  %348 = vmatpush2.msra.mxu0 0.0
  %349 = vmatprep.mubr.f32.mxu0 0.0
  %350 = vmatmul.mubr.f32.gmra.mxu0 %v283
  %v351 = vpop.f32.mrf.mxu0
  %v352 = vadd.f32 %v163, %v351
  %v353 = vpop.f32.mrf.mxu0
  %354 = vdwg.mxu0
  %355 = vst [vmem:[%s7] sm:$0x7] %v352
  %356 = vset.pattern.permute.xlu0 1
  %357 = vperm.xlu0 %356, %v165
  %v358 = vpop.permute.xlu0 %357
  %360 = vset.pattern.permute.xlu0 1
  %361 = vperm.xlu0 %360, %v166
  %v362 = vpop.permute.xlu0 %361
  %364 = vset.pattern.permute.xlu0 1
  %365 = vperm.xlu0 %364, %v167
  %v366 = vpop.permute.xlu0 %365
  %368 = vset.pattern.permute.xlu0 1
  %369 = vperm.xlu0 %368, %v168
  %v370 = vpop.permute.xlu0 %369
  %v372 = vadd.f32 %v140, %v358
  %v373 = vadd.f32 %v141, %v362
  %v374 = vadd.f32 %v142, %v366
  %v375 = vadd.f32 %v143, %v370
  %v376 = vmax.f32 %v372, 0.0
  %v377 = vmax.f32 %v373, 0.0
  %v378 = vmax.f32 %v374, 0.0
  %v379 = vmax.f32 %v375, 0.0
  %380 = vmatprep.subr.mxu0 0.0
  %381 = vmatpush1.msra.mxu0 0.0
  %382 = vmatprep.subr.mxu0 0.0
  %383 = vmatpush1.msra.mxu0 0.0
  %384 = vmatprep.subr.mxu0 0.0
  %385 = vmatpush1.msra.mxu0 0.0
  %386 = vmatprep.subr.mxu0 0.0
  %387 = vmatpush1.msra.mxu0 0.0
  %388 = vmatprep.subr.mxu0 0.0
  %389 = vmatpush1.msra.mxu0 0.0
  %390 = vmatprep.subr.mxu0 0.0
  %391 = vmatpush1.msra.mxu0 0.0
  %392 = vmatprep.subr.mxu0 0.0
  %393 = vmatpush1.msra.mxu0 0.0
  %394 = vmatprep.subr.mxu0 0.0
  %395 = vmatpush1.msra.mxu0 0.0
  %396 = vmatprep.subr.mxu0 0.0
  %397 = vmatpush1.msra.mxu0 0.0
  %398 = vmatprep.subr.mxu0 0.0
  %399 = vmatpush1.msra.mxu0 0.0
  %400 = vmatprep.subr.mxu0 0.0
  %401 = vmatpush1.msra.mxu0 0.0
  %402 = vmatprep.subr.mxu0 0.0
  %403 = vmatpush1.msra.mxu0 0.0
  %404 = vmatprep.subr.mxu0 0.0
  %405 = vmatpush1.msra.mxu0 %v379
  %406 = vmatprep.subr.mxu0 0.0
  %407 = vmatpush1.msra.mxu0 %v378
  %408 = vmatprep.subr.mxu0 0.0
  %409 = vmatpush1.msra.mxu0 %v377
  %410 = vmatprep.subr.mxu0 0.0
  %411 = vmatpush1.msra.mxu0 %v376
  %412 = vmatprep.subr.mxu0 0.0
  %413 = vmatpush2.msra.mxu0 0.0
  %414 = vmatprep.subr.mxu0 0.0
  %415 = vmatpush2.msra.mxu0 0.0
  %416 = vmatprep.subr.mxu0 0.0
  %417 = vmatpush2.msra.mxu0 0.0
  %418 = vmatprep.subr.mxu0 0.0
  %419 = vmatpush2.msra.mxu0 0.0
  %420 = vmatprep.subr.mxu0 0.0
  %421 = vmatpush2.msra.mxu0 0.0
  %422 = vmatprep.subr.mxu0 0.0
  %423 = vmatpush2.msra.mxu0 0.0
  %424 = vmatprep.subr.mxu0 0.0
  %425 = vmatpush2.msra.mxu0 0.0
  %426 = vmatprep.subr.mxu0 0.0
  %427 = vmatpush2.msra.mxu0 0.0
  %428 = vmatprep.subr.mxu0 0.0
  %429 = vmatpush2.msra.mxu0 0.0
  %430 = vmatprep.subr.mxu0 0.0
  %431 = vmatpush2.msra.mxu0 0.0
  %432 = vmatprep.subr.mxu0 0.0
  %433 = vmatpush2.msra.mxu0 0.0
  %434 = vmatprep.subr.mxu0 0.0
  %435 = vmatpush2.msra.mxu0 0.0
  %436 = vmatprep.subr.mxu0 0.0
  %437 = vmatpush2.msra.mxu0 0.0
  %438 = vmatprep.subr.mxu0 0.0
  %439 = vmatpush2.msra.mxu0 0.0
  %440 = vmatprep.subr.mxu0 0.0
  %441 = vmatpush2.msra.mxu0 0.0
  %442 = vmatprep.subr.mxu0 0.0
  %443 = vmatpush2.msra.mxu0 0.0
  %444 = vmatprep.mubr.f32.mxu0 0.0
  %445 = vmatmul.mubr.f32.gmra.mxu0 %v199
  %v446 = vpop.f32.mrf.mxu0
  %v447 = vadd.f32 %v152, %v446
  %v448 = vpop.f32.mrf.mxu0
  %449 = vmatprep.mubr.f32.mxu0 0.0
  %450 = vmatmul.mubr.f32.gmra.mxu0 %v202
  %v451 = vpop.f32.mrf.mxu0
  %v452 = vadd.f32 %v157, %v451
  %v453 = vpop.f32.mrf.mxu0
  %454 = vdwg.mxu0
  %v455 = vmax.f32 %v447, 0.0
  %v456 = vmax.f32 %v452, 0.0
  %457 = vmatprep.subr.mxu0 0.0
  %458 = vmatpush1.msra.mxu0 0.0
  %459 = vmatprep.subr.mxu0 0.0
  %460 = vmatpush1.msra.mxu0 0.0
  %461 = vmatprep.subr.mxu0 0.0
  %462 = vmatpush1.msra.mxu0 0.0
  %463 = vmatprep.subr.mxu0 0.0
  %464 = vmatpush1.msra.mxu0 0.0
  %465 = vmatprep.subr.mxu0 0.0
  %466 = vmatpush1.msra.mxu0 0.0
  %467 = vmatprep.subr.mxu0 0.0
  %468 = vmatpush1.msra.mxu0 0.0
  %469 = vmatprep.subr.mxu0 0.0
  %470 = vmatpush1.msra.mxu0 0.0
  %471 = vmatprep.subr.mxu0 0.0
  %472 = vmatpush1.msra.mxu0 0.0
  %473 = vmatprep.subr.mxu0 0.0
  %474 = vmatpush1.msra.mxu0 0.0
  %475 = vmatprep.subr.mxu0 0.0
  %476 = vmatpush1.msra.mxu0 0.0
  %477 = vmatprep.subr.mxu0 0.0
  %478 = vmatpush1.msra.mxu0 0.0
  %479 = vmatprep.subr.mxu0 0.0
  %480 = vmatpush1.msra.mxu0 0.0
  %481 = vmatprep.subr.mxu0 0.0
  %482 = vmatpush1.msra.mxu0 0.0
  %483 = vmatprep.subr.mxu0 0.0
  %484 = vmatpush1.msra.mxu0 0.0
  %485 = vmatprep.subr.mxu0 0.0
  %486 = vmatpush1.msra.mxu0 %v456
  %487 = vmatprep.subr.mxu0 0.0
  %488 = vmatpush1.msra.mxu0 %v455
  %489 = vmatprep.subr.mxu0 0.0
  %490 = vmatpush2.msra.mxu0 0.0
  %491 = vmatprep.subr.mxu0 0.0
  %492 = vmatpush2.msra.mxu0 0.0
  %493 = vmatprep.subr.mxu0 0.0
  %494 = vmatpush2.msra.mxu0 0.0
  %495 = vmatprep.subr.mxu0 0.0
  %496 = vmatpush2.msra.mxu0 0.0
  %497 = vmatprep.subr.mxu0 0.0
  %498 = vmatpush2.msra.mxu0 0.0
  %499 = vmatprep.subr.mxu0 0.0
  %500 = vmatpush2.msra.mxu0 0.0
  %501 = vmatprep.subr.mxu0 0.0
  %502 = vmatpush2.msra.mxu0 0.0
  %503 = vmatprep.subr.mxu0 0.0
  %504 = vmatpush2.msra.mxu0 0.0
  %505 = vmatprep.subr.mxu0 0.0
  %506 = vmatpush2.msra.mxu0 0.0
  %507 = vmatprep.subr.mxu0 0.0
  %508 = vmatpush2.msra.mxu0 0.0
  %509 = vmatprep.subr.mxu0 0.0
  %510 = vmatpush2.msra.mxu0 0.0
  %511 = vmatprep.subr.mxu0 0.0
  %512 = vmatpush2.msra.mxu0 0.0
  %513 = vmatprep.subr.mxu0 0.0
  %514 = vmatpush2.msra.mxu0 0.0
  %515 = vmatprep.subr.mxu0 0.0
  %516 = vmatpush2.msra.mxu0 0.0
  %517 = vmatprep.subr.mxu0 0.0
  %518 = vmatpush2.msra.mxu0 0.0
  %519 = vmatprep.subr.mxu0 0.0
  %520 = vmatpush2.msra.mxu0 0.0
  %521 = vmatprep.mubr.f32.mxu0 0.0
  %522 = vmatmul.mubr.f32.gmra.mxu0 %v283
  %v523 = vpop.f32.mrf.mxu0
  %v524 = vadd.f32 %v163, %v523
  %v525 = vpop.f32.mrf.mxu0
  %526 = vdwg.mxu0
  %527 = vst [vmem:[%s7 + $0x3] sm:$0x7] %v524
  %528 = vset.pattern.permute.xlu0 2
  %529 = vperm.xlu0 %528, %v165
  %v530 = vpop.permute.xlu0 %529
  %532 = vset.pattern.permute.xlu0 2
  %533 = vperm.xlu0 %532, %v166
  %v534 = vpop.permute.xlu0 %533
  %536 = vset.pattern.permute.xlu0 2
  %537 = vperm.xlu0 %536, %v167
  %v538 = vpop.permute.xlu0 %537
  %540 = vset.pattern.permute.xlu0 2
  %541 = vperm.xlu0 %540, %v168
  %v542 = vpop.permute.xlu0 %541
  %v544 = vadd.f32 %v140, %v530
  %v545 = vadd.f32 %v141, %v534
  %v546 = vadd.f32 %v142, %v538
  %v547 = vadd.f32 %v143, %v542
  %v548 = vmax.f32 %v544, 0.0
  %v549 = vmax.f32 %v545, 0.0
  %v550 = vmax.f32 %v546, 0.0
  %v551 = vmax.f32 %v547, 0.0
  %552 = vmatprep.subr.mxu0 0.0
  %553 = vmatpush1.msra.mxu0 0.0
  %554 = vmatprep.subr.mxu0 0.0
  %555 = vmatpush1.msra.mxu0 0.0
  %556 = vmatprep.subr.mxu0 0.0
  %557 = vmatpush1.msra.mxu0 0.0
  %558 = vmatprep.subr.mxu0 0.0
  %559 = vmatpush1.msra.mxu0 0.0
  %560 = vmatprep.subr.mxu0 0.0
  %561 = vmatpush1.msra.mxu0 0.0
  %562 = vmatprep.subr.mxu0 0.0
  %563 = vmatpush1.msra.mxu0 0.0
  %564 = vmatprep.subr.mxu0 0.0
  %565 = vmatpush1.msra.mxu0 0.0
  %566 = vmatprep.subr.mxu0 0.0
  %567 = vmatpush1.msra.mxu0 0.0
  %568 = vmatprep.subr.mxu0 0.0
  %569 = vmatpush1.msra.mxu0 0.0
  %570 = vmatprep.subr.mxu0 0.0
  %571 = vmatpush1.msra.mxu0 0.0
  %572 = vmatprep.subr.mxu0 0.0
  %573 = vmatpush1.msra.mxu0 0.0
  %574 = vmatprep.subr.mxu0 0.0
  %575 = vmatpush1.msra.mxu0 0.0
  %576 = vmatprep.subr.mxu0 0.0
  %577 = vmatpush1.msra.mxu0 %v551
  %578 = vmatprep.subr.mxu0 0.0
  %579 = vmatpush1.msra.mxu0 %v550
  %580 = vmatprep.subr.mxu0 0.0
  %581 = vmatpush1.msra.mxu0 %v549
  %582 = vmatprep.subr.mxu0 0.0
  %583 = vmatpush1.msra.mxu0 %v548
  %584 = vmatprep.subr.mxu0 0.0
  %585 = vmatpush2.msra.mxu0 0.0
  %586 = vmatprep.subr.mxu0 0.0
  %587 = vmatpush2.msra.mxu0 0.0
  %588 = vmatprep.subr.mxu0 0.0
  %589 = vmatpush2.msra.mxu0 0.0
  %590 = vmatprep.subr.mxu0 0.0
  %591 = vmatpush2.msra.mxu0 0.0
  %592 = vmatprep.subr.mxu0 0.0
  %593 = vmatpush2.msra.mxu0 0.0
  %594 = vmatprep.subr.mxu0 0.0
  %595 = vmatpush2.msra.mxu0 0.0
  %596 = vmatprep.subr.mxu0 0.0
  %597 = vmatpush2.msra.mxu0 0.0
  %598 = vmatprep.subr.mxu0 0.0
  %599 = vmatpush2.msra.mxu0 0.0
  %600 = vmatprep.subr.mxu0 0.0
  %601 = vmatpush2.msra.mxu0 0.0
  %602 = vmatprep.subr.mxu0 0.0
  %603 = vmatpush2.msra.mxu0 0.0
  %604 = vmatprep.subr.mxu0 0.0
  %605 = vmatpush2.msra.mxu0 0.0
  %606 = vmatprep.subr.mxu0 0.0
  %607 = vmatpush2.msra.mxu0 0.0
  %608 = vmatprep.subr.mxu0 0.0
  %609 = vmatpush2.msra.mxu0 0.0
  %610 = vmatprep.subr.mxu0 0.0
  %611 = vmatpush2.msra.mxu0 0.0
  %612 = vmatprep.subr.mxu0 0.0
  %613 = vmatpush2.msra.mxu0 0.0
  %614 = vmatprep.subr.mxu0 0.0
  %615 = vmatpush2.msra.mxu0 0.0
  %616 = vmatprep.mubr.f32.mxu0 0.0
  %617 = vmatmul.mubr.f32.gmra.mxu0 %v199
  %v618 = vpop.f32.mrf.mxu0
  %v619 = vadd.f32 %v152, %v618
  %v620 = vpop.f32.mrf.mxu0
  %621 = vmatprep.mubr.f32.mxu0 0.0
  %622 = vmatmul.mubr.f32.gmra.mxu0 %v202
  %v623 = vpop.f32.mrf.mxu0
  %v624 = vadd.f32 %v157, %v623
  %v625 = vpop.f32.mrf.mxu0
  %626 = vdwg.mxu0
  %v627 = vmax.f32 %v619, 0.0
  %v628 = vmax.f32 %v624, 0.0
  %629 = vmatprep.subr.mxu0 0.0
  %630 = vmatpush1.msra.mxu0 0.0
  %631 = vmatprep.subr.mxu0 0.0
  %632 = vmatpush1.msra.mxu0 0.0
  %633 = vmatprep.subr.mxu0 0.0
  %634 = vmatpush1.msra.mxu0 0.0
  %635 = vmatprep.subr.mxu0 0.0
  %636 = vmatpush1.msra.mxu0 0.0
  %637 = vmatprep.subr.mxu0 0.0
  %638 = vmatpush1.msra.mxu0 0.0
  %639 = vmatprep.subr.mxu0 0.0
  %640 = vmatpush1.msra.mxu0 0.0
  %641 = vmatprep.subr.mxu0 0.0
  %642 = vmatpush1.msra.mxu0 0.0
  %643 = vmatprep.subr.mxu0 0.0
  %644 = vmatpush1.msra.mxu0 0.0
  %645 = vmatprep.subr.mxu0 0.0
  %646 = vmatpush1.msra.mxu0 0.0
  %647 = vmatprep.subr.mxu0 0.0
  %648 = vmatpush1.msra.mxu0 0.0
  %649 = vmatprep.subr.mxu0 0.0
  %650 = vmatpush1.msra.mxu0 0.0
  %651 = vmatprep.subr.mxu0 0.0
  %652 = vmatpush1.msra.mxu0 0.0
  %653 = vmatprep.subr.mxu0 0.0
  %654 = vmatpush1.msra.mxu0 0.0
  %655 = vmatprep.subr.mxu0 0.0
  %656 = vmatpush1.msra.mxu0 0.0
  %657 = vmatprep.subr.mxu0 0.0
  %658 = vmatpush1.msra.mxu0 %v628
  %659 = vmatprep.subr.mxu0 0.0
  %660 = vmatpush1.msra.mxu0 %v627
  %661 = vmatprep.subr.mxu0 0.0
  %662 = vmatpush2.msra.mxu0 0.0
  %663 = vmatprep.subr.mxu0 0.0
  %664 = vmatpush2.msra.mxu0 0.0
  %665 = vmatprep.subr.mxu0 0.0
  %666 = vmatpush2.msra.mxu0 0.0
  %667 = vmatprep.subr.mxu0 0.0
  %668 = vmatpush2.msra.mxu0 0.0
  %669 = vmatprep.subr.mxu0 0.0
  %670 = vmatpush2.msra.mxu0 0.0
  %671 = vmatprep.subr.mxu0 0.0
  %672 = vmatpush2.msra.mxu0 0.0
  %673 = vmatprep.subr.mxu0 0.0
  %674 = vmatpush2.msra.mxu0 0.0
  %675 = vmatprep.subr.mxu0 0.0
  %676 = vmatpush2.msra.mxu0 0.0
  %677 = vmatprep.subr.mxu0 0.0
  %678 = vmatpush2.msra.mxu0 0.0
  %679 = vmatprep.subr.mxu0 0.0
  %680 = vmatpush2.msra.mxu0 0.0
  %681 = vmatprep.subr.mxu0 0.0
  %682 = vmatpush2.msra.mxu0 0.0
  %683 = vmatprep.subr.mxu0 0.0
  %684 = vmatpush2.msra.mxu0 0.0
  %685 = vmatprep.subr.mxu0 0.0
  %686 = vmatpush2.msra.mxu0 0.0
  %687 = vmatprep.subr.mxu0 0.0
  %688 = vmatpush2.msra.mxu0 0.0
  %689 = vmatprep.subr.mxu0 0.0
  %690 = vmatpush2.msra.mxu0 0.0
  %691 = vmatprep.subr.mxu0 0.0
  %692 = vmatpush2.msra.mxu0 0.0
  %693 = vmatprep.mubr.f32.mxu0 0.0
  %694 = vmatmul.mubr.f32.gmra.mxu0 %v283
  %v695 = vpop.f32.mrf.mxu0
  %v696 = vadd.f32 %v163, %v695
  %v697 = vpop.f32.mrf.mxu0
  %698 = vdwg.mxu0
  %699 = vst [vmem:[%s7 + $0x6] sm:$0x7] %v696
  %700 = vset.pattern.permute.xlu0 3
  %701 = vperm.xlu0 %700, %v165
  %v702 = vpop.permute.xlu0 %701
  %704 = vset.pattern.permute.xlu0 3
  %705 = vperm.xlu0 %704, %v166
  %v706 = vpop.permute.xlu0 %705
  %708 = vset.pattern.permute.xlu0 3
  %709 = vperm.xlu0 %708, %v167
  %v710 = vpop.permute.xlu0 %709
  %712 = vset.pattern.permute.xlu0 3
  %713 = vperm.xlu0 %712, %v168
  %v714 = vpop.permute.xlu0 %713
  %v716 = vadd.f32 %v140, %v702
  %v717 = vadd.f32 %v141, %v706
  %v718 = vadd.f32 %v142, %v710
  %v719 = vadd.f32 %v143, %v714
  %v720 = vmax.f32 %v716, 0.0
  %v721 = vmax.f32 %v717, 0.0
  %v722 = vmax.f32 %v718, 0.0
  %v723 = vmax.f32 %v719, 0.0
  %724 = vmatprep.subr.mxu0 0.0
  %725 = vmatpush1.msra.mxu0 0.0
  %726 = vmatprep.subr.mxu0 0.0
  %727 = vmatpush1.msra.mxu0 0.0
  %728 = vmatprep.subr.mxu0 0.0
  %729 = vmatpush1.msra.mxu0 0.0
  %730 = vmatprep.subr.mxu0 0.0
  %731 = vmatpush1.msra.mxu0 0.0
  %732 = vmatprep.subr.mxu0 0.0
  %733 = vmatpush1.msra.mxu0 0.0
  %734 = vmatprep.subr.mxu0 0.0
  %735 = vmatpush1.msra.mxu0 0.0
  %736 = vmatprep.subr.mxu0 0.0
  %737 = vmatpush1.msra.mxu0 0.0
  %738 = vmatprep.subr.mxu0 0.0
  %739 = vmatpush1.msra.mxu0 0.0
  %740 = vmatprep.subr.mxu0 0.0
  %741 = vmatpush1.msra.mxu0 0.0
  %742 = vmatprep.subr.mxu0 0.0
  %743 = vmatpush1.msra.mxu0 0.0
  %744 = vmatprep.subr.mxu0 0.0
  %745 = vmatpush1.msra.mxu0 0.0
  %746 = vmatprep.subr.mxu0 0.0
  %747 = vmatpush1.msra.mxu0 0.0
  %748 = vmatprep.subr.mxu0 0.0
  %749 = vmatpush1.msra.mxu0 %v723
  %750 = vmatprep.subr.mxu0 0.0
  %751 = vmatpush1.msra.mxu0 %v722
  %752 = vmatprep.subr.mxu0 0.0
  %753 = vmatpush1.msra.mxu0 %v721
  %754 = vmatprep.subr.mxu0 0.0
  %755 = vmatpush1.msra.mxu0 %v720
  %756 = vmatprep.subr.mxu0 0.0
  %757 = vmatpush2.msra.mxu0 0.0
  %758 = vmatprep.subr.mxu0 0.0
  %759 = vmatpush2.msra.mxu0 0.0
  %760 = vmatprep.subr.mxu0 0.0
  %761 = vmatpush2.msra.mxu0 0.0
  %762 = vmatprep.subr.mxu0 0.0
  %763 = vmatpush2.msra.mxu0 0.0
  %764 = vmatprep.subr.mxu0 0.0
  %765 = vmatpush2.msra.mxu0 0.0
  %766 = vmatprep.subr.mxu0 0.0
  %767 = vmatpush2.msra.mxu0 0.0
  %768 = vmatprep.subr.mxu0 0.0
  %769 = vmatpush2.msra.mxu0 0.0
  %770 = vmatprep.subr.mxu0 0.0
  %771 = vmatpush2.msra.mxu0 0.0
  %772 = vmatprep.subr.mxu0 0.0
  %773 = vmatpush2.msra.mxu0 0.0
  %774 = vmatprep.subr.mxu0 0.0
  %775 = vmatpush2.msra.mxu0 0.0
  %776 = vmatprep.subr.mxu0 0.0
  %777 = vmatpush2.msra.mxu0 0.0
  %778 = vmatprep.subr.mxu0 0.0
  %779 = vmatpush2.msra.mxu0 0.0
  %780 = vmatprep.subr.mxu0 0.0
  %781 = vmatpush2.msra.mxu0 0.0
  %782 = vmatprep.subr.mxu0 0.0
  %783 = vmatpush2.msra.mxu0 0.0
  %784 = vmatprep.subr.mxu0 0.0
  %785 = vmatpush2.msra.mxu0 0.0
  %786 = vmatprep.subr.mxu0 0.0
  %787 = vmatpush2.msra.mxu0 0.0
  %788 = vmatprep.mubr.f32.mxu0 0.0
  %789 = vmatmul.mubr.f32.gmra.mxu0 %v199
  %v790 = vpop.f32.mrf.mxu0
  %v791 = vadd.f32 %v152, %v790
  %v792 = vpop.f32.mrf.mxu0
  %793 = vmatprep.mubr.f32.mxu0 0.0
  %794 = vmatmul.mubr.f32.gmra.mxu0 %v202
  %v795 = vpop.f32.mrf.mxu0
  %v796 = vadd.f32 %v157, %v795
  %v797 = vpop.f32.mrf.mxu0
  %798 = vdwg.mxu0
  %v799 = vmax.f32 %v791, 0.0
  %v800 = vmax.f32 %v796, 0.0
  %801 = vmatprep.subr.mxu0 0.0
  %802 = vmatpush1.msra.mxu0 0.0
  %803 = vmatprep.subr.mxu0 0.0
  %804 = vmatpush1.msra.mxu0 0.0
  %805 = vmatprep.subr.mxu0 0.0
  %806 = vmatpush1.msra.mxu0 0.0
  %807 = vmatprep.subr.mxu0 0.0
  %808 = vmatpush1.msra.mxu0 0.0
  %809 = vmatprep.subr.mxu0 0.0
  %810 = vmatpush1.msra.mxu0 0.0
  %811 = vmatprep.subr.mxu0 0.0
  %812 = vmatpush1.msra.mxu0 0.0
  %813 = vmatprep.subr.mxu0 0.0
  %814 = vmatpush1.msra.mxu0 0.0
  %815 = vmatprep.subr.mxu0 0.0
  %816 = vmatpush1.msra.mxu0 0.0
  %817 = vmatprep.subr.mxu0 0.0
  %818 = vmatpush1.msra.mxu0 0.0
  %819 = vmatprep.subr.mxu0 0.0
  %820 = vmatpush1.msra.mxu0 0.0
  %821 = vmatprep.subr.mxu0 0.0
  %822 = vmatpush1.msra.mxu0 0.0
  %823 = vmatprep.subr.mxu0 0.0
  %824 = vmatpush1.msra.mxu0 0.0
  %825 = vmatprep.subr.mxu0 0.0
  %826 = vmatpush1.msra.mxu0 0.0
  %827 = vmatprep.subr.mxu0 0.0
  %828 = vmatpush1.msra.mxu0 0.0
  %829 = vmatprep.subr.mxu0 0.0
  %830 = vmatpush1.msra.mxu0 %v800
  %831 = vmatprep.subr.mxu0 0.0
  %832 = vmatpush1.msra.mxu0 %v799
  %833 = vmatprep.subr.mxu0 0.0
  %834 = vmatpush2.msra.mxu0 0.0
  %835 = vmatprep.subr.mxu0 0.0
  %836 = vmatpush2.msra.mxu0 0.0
  %837 = vmatprep.subr.mxu0 0.0
  %838 = vmatpush2.msra.mxu0 0.0
  %839 = vmatprep.subr.mxu0 0.0
  %840 = vmatpush2.msra.mxu0 0.0
  %841 = vmatprep.subr.mxu0 0.0
  %842 = vmatpush2.msra.mxu0 0.0
  %843 = vmatprep.subr.mxu0 0.0
  %844 = vmatpush2.msra.mxu0 0.0
  %845 = vmatprep.subr.mxu0 0.0
  %846 = vmatpush2.msra.mxu0 0.0
  %847 = vmatprep.subr.mxu0 0.0
  %848 = vmatpush2.msra.mxu0 0.0
  %849 = vmatprep.subr.mxu0 0.0
  %850 = vmatpush2.msra.mxu0 0.0
  %851 = vmatprep.subr.mxu0 0.0
  %852 = vmatpush2.msra.mxu0 0.0
  %853 = vmatprep.subr.mxu0 0.0
  %854 = vmatpush2.msra.mxu0 0.0
  %855 = vmatprep.subr.mxu0 0.0
  %856 = vmatpush2.msra.mxu0 0.0
  %857 = vmatprep.subr.mxu0 0.0
  %858 = vmatpush2.msra.mxu0 0.0
  %859 = vmatprep.subr.mxu0 0.0
  %860 = vmatpush2.msra.mxu0 0.0
  %861 = vmatprep.subr.mxu0 0.0
  %862 = vmatpush2.msra.mxu0 0.0
  %863 = vmatprep.subr.mxu0 0.0
  %864 = vmatpush2.msra.mxu0 0.0
  %865 = vmatprep.mubr.f32.mxu0 0.0
  %866 = vmatmul.mubr.f32.gmra.mxu0 %v283
  %v867 = vpop.f32.mrf.mxu0
  %v868 = vadd.f32 %v163, %v867
  %v869 = vpop.f32.mrf.mxu0
  %870 = vdwg.mxu0
  %871 = vst [vmem:[%s7 + $0x9] sm:$0x7] %v868
  %872 = vset.pattern.permute.xlu0 4
  %873 = vperm.xlu0 %872, %v165
  %v874 = vpop.permute.xlu0 %873
  %876 = vset.pattern.permute.xlu0 4
  %877 = vperm.xlu0 %876, %v166
  %v878 = vpop.permute.xlu0 %877
  %880 = vset.pattern.permute.xlu0 4
  %881 = vperm.xlu0 %880, %v167
  %v882 = vpop.permute.xlu0 %881
  %884 = vset.pattern.permute.xlu0 4
  %885 = vperm.xlu0 %884, %v168
  %v886 = vpop.permute.xlu0 %885
  %v888 = vadd.f32 %v140, %v874
  %v889 = vadd.f32 %v141, %v878
  %v890 = vadd.f32 %v142, %v882
  %v891 = vadd.f32 %v143, %v886
  %v892 = vmax.f32 %v888, 0.0
  %v893 = vmax.f32 %v889, 0.0
  %v894 = vmax.f32 %v890, 0.0
  %v895 = vmax.f32 %v891, 0.0
  %896 = vmatprep.subr.mxu0 0.0
  %897 = vmatpush1.msra.mxu0 0.0
  %898 = vmatprep.subr.mxu0 0.0
  %899 = vmatpush1.msra.mxu0 0.0
  %900 = vmatprep.subr.mxu0 0.0
  %901 = vmatpush1.msra.mxu0 0.0
  %902 = vmatprep.subr.mxu0 0.0
  %903 = vmatpush1.msra.mxu0 0.0
  %904 = vmatprep.subr.mxu0 0.0
  %905 = vmatpush1.msra.mxu0 0.0
  %906 = vmatprep.subr.mxu0 0.0
  %907 = vmatpush1.msra.mxu0 0.0
  %908 = vmatprep.subr.mxu0 0.0
  %909 = vmatpush1.msra.mxu0 0.0
  %910 = vmatprep.subr.mxu0 0.0
  %911 = vmatpush1.msra.mxu0 0.0
  %912 = vmatprep.subr.mxu0 0.0
  %913 = vmatpush1.msra.mxu0 0.0
  %914 = vmatprep.subr.mxu0 0.0
  %915 = vmatpush1.msra.mxu0 0.0
  %916 = vmatprep.subr.mxu0 0.0
  %917 = vmatpush1.msra.mxu0 0.0
  %918 = vmatprep.subr.mxu0 0.0
  %919 = vmatpush1.msra.mxu0 0.0
  %920 = vmatprep.subr.mxu0 0.0
  %921 = vmatpush1.msra.mxu0 %v895
  %922 = vmatprep.subr.mxu0 0.0
  %923 = vmatpush1.msra.mxu0 %v894
  %924 = vmatprep.subr.mxu0 0.0
  %925 = vmatpush1.msra.mxu0 %v893
  %926 = vmatprep.subr.mxu0 0.0
  %927 = vmatpush1.msra.mxu0 %v892
  %928 = vmatprep.subr.mxu0 0.0
  %929 = vmatpush2.msra.mxu0 0.0
  %930 = vmatprep.subr.mxu0 0.0
  %931 = vmatpush2.msra.mxu0 0.0
  %932 = vmatprep.subr.mxu0 0.0
  %933 = vmatpush2.msra.mxu0 0.0
  %934 = vmatprep.subr.mxu0 0.0
  %935 = vmatpush2.msra.mxu0 0.0
  %936 = vmatprep.subr.mxu0 0.0
  %937 = vmatpush2.msra.mxu0 0.0
  %938 = vmatprep.subr.mxu0 0.0
  %939 = vmatpush2.msra.mxu0 0.0
  %940 = vmatprep.subr.mxu0 0.0
  %941 = vmatpush2.msra.mxu0 0.0
  %942 = vmatprep.subr.mxu0 0.0
  %943 = vmatpush2.msra.mxu0 0.0
  %944 = vmatprep.subr.mxu0 0.0
  %945 = vmatpush2.msra.mxu0 0.0
  %946 = vmatprep.subr.mxu0 0.0
  %947 = vmatpush2.msra.mxu0 0.0
  %948 = vmatprep.subr.mxu0 0.0
  %949 = vmatpush2.msra.mxu0 0.0
  %950 = vmatprep.subr.mxu0 0.0
  %951 = vmatpush2.msra.mxu0 0.0
  %952 = vmatprep.subr.mxu0 0.0
  %953 = vmatpush2.msra.mxu0 0.0
  %954 = vmatprep.subr.mxu0 0.0
  %955 = vmatpush2.msra.mxu0 0.0
  %956 = vmatprep.subr.mxu0 0.0
  %957 = vmatpush2.msra.mxu0 0.0
  %958 = vmatprep.subr.mxu0 0.0
  %959 = vmatpush2.msra.mxu0 0.0
  %960 = vmatprep.mubr.f32.mxu0 0.0
  %961 = vmatmul.mubr.f32.gmra.mxu0 %v199
  %v962 = vpop.f32.mrf.mxu0
  %v963 = vadd.f32 %v152, %v962
  %v964 = vpop.f32.mrf.mxu0
  %965 = vmatprep.mubr.f32.mxu0 0.0
  %966 = vmatmul.mubr.f32.gmra.mxu0 %v202
  %v967 = vpop.f32.mrf.mxu0
  %v968 = vadd.f32 %v157, %v967
  %v969 = vpop.f32.mrf.mxu0
  %970 = vdwg.mxu0
  %v971 = vmax.f32 %v963, 0.0
  %v972 = vmax.f32 %v968, 0.0
  %973 = vmatprep.subr.mxu0 0.0
  %974 = vmatpush1.msra.mxu0 0.0
  %975 = vmatprep.subr.mxu0 0.0
  %976 = vmatpush1.msra.mxu0 0.0
  %977 = vmatprep.subr.mxu0 0.0
  %978 = vmatpush1.msra.mxu0 0.0
  %979 = vmatprep.subr.mxu0 0.0
  %980 = vmatpush1.msra.mxu0 0.0
  %981 = vmatprep.subr.mxu0 0.0
  %982 = vmatpush1.msra.mxu0 0.0
  %983 = vmatprep.subr.mxu0 0.0
  %984 = vmatpush1.msra.mxu0 0.0
  %985 = vmatprep.subr.mxu0 0.0
  %986 = vmatpush1.msra.mxu0 0.0
  %987 = vmatprep.subr.mxu0 0.0
  %988 = vmatpush1.msra.mxu0 0.0
  %989 = vmatprep.subr.mxu0 0.0
  %990 = vmatpush1.msra.mxu0 0.0
  %991 = vmatprep.subr.mxu0 0.0
  %992 = vmatpush1.msra.mxu0 0.0
  %993 = vmatprep.subr.mxu0 0.0
  %994 = vmatpush1.msra.mxu0 0.0
  %995 = vmatprep.subr.mxu0 0.0
  %996 = vmatpush1.msra.mxu0 0.0
  %997 = vmatprep.subr.mxu0 0.0
  %998 = vmatpush1.msra.mxu0 0.0
  %999 = vmatprep.subr.mxu0 0.0
  %1000 = vmatpush1.msra.mxu0 0.0
  %1001 = vmatprep.subr.mxu0 0.0
  %1002 = vmatpush1.msra.mxu0 %v972
  %1003 = vmatprep.subr.mxu0 0.0
  %1004 = vmatpush1.msra.mxu0 %v971
  %1005 = vmatprep.subr.mxu0 0.0
  %1006 = vmatpush2.msra.mxu0 0.0
  %1007 = vmatprep.subr.mxu0 0.0
  %1008 = vmatpush2.msra.mxu0 0.0
  %1009 = vmatprep.subr.mxu0 0.0
  %1010 = vmatpush2.msra.mxu0 0.0
  %1011 = vmatprep.subr.mxu0 0.0
  %1012 = vmatpush2.msra.mxu0 0.0
  %1013 = vmatprep.subr.mxu0 0.0
  %1014 = vmatpush2.msra.mxu0 0.0
  %1015 = vmatprep.subr.mxu0 0.0
  %1016 = vmatpush2.msra.mxu0 0.0
  %1017 = vmatprep.subr.mxu0 0.0
  %1018 = vmatpush2.msra.mxu0 0.0
  %1019 = vmatprep.subr.mxu0 0.0
  %1020 = vmatpush2.msra.mxu0 0.0
  %1021 = vmatprep.subr.mxu0 0.0
  %1022 = vmatpush2.msra.mxu0 0.0
  %1023 = vmatprep.subr.mxu0 0.0
  %1024 = vmatpush2.msra.mxu0 0.0
  %1025 = vmatprep.subr.mxu0 0.0
  %1026 = vmatpush2.msra.mxu0 0.0
  %1027 = vmatprep.subr.mxu0 0.0
  %1028 = vmatpush2.msra.mxu0 0.0
  %1029 = vmatprep.subr.mxu0 0.0
  %1030 = vmatpush2.msra.mxu0 0.0
  %1031 = vmatprep.subr.mxu0 0.0
  %1032 = vmatpush2.msra.mxu0 0.0
  %1033 = vmatprep.subr.mxu0 0.0
  %1034 = vmatpush2.msra.mxu0 0.0
  %1035 = vmatprep.subr.mxu0 0.0
  %1036 = vmatpush2.msra.mxu0 0.0
  %1037 = vmatprep.mubr.f32.mxu0 0.0
  %1038 = vmatmul.mubr.f32.gmra.mxu0 %v283
  %v1039 = vpop.f32.mrf.mxu0
  %v1040 = vadd.f32 %v163, %v1039
  %v1041 = vpop.f32.mrf.mxu0
  %1042 = vdwg.mxu0
  %1043 = vst [vmem:[%s7 + $0xc] sm:$0x7] %v1040
  %1044 = vset.pattern.permute.xlu0 5
  %1045 = vperm.xlu0 %1044, %v165
  %v1046 = vpop.permute.xlu0 %1045
  %1048 = vset.pattern.permute.xlu0 5
  %1049 = vperm.xlu0 %1048, %v166
  %v1050 = vpop.permute.xlu0 %1049
  %1052 = vset.pattern.permute.xlu0 5
  %1053 = vperm.xlu0 %1052, %v167
  %v1054 = vpop.permute.xlu0 %1053
  %1056 = vset.pattern.permute.xlu0 5
  %1057 = vperm.xlu0 %1056, %v168
  %v1058 = vpop.permute.xlu0 %1057
  %v1060 = vadd.f32 %v140, %v1046
  %v1061 = vadd.f32 %v141, %v1050
  %v1062 = vadd.f32 %v142, %v1054
  %v1063 = vadd.f32 %v143, %v1058
  %v1064 = vmax.f32 %v1060, 0.0
  %v1065 = vmax.f32 %v1061, 0.0
  %v1066 = vmax.f32 %v1062, 0.0
  %v1067 = vmax.f32 %v1063, 0.0
  %1068 = vmatprep.subr.mxu0 0.0
  %1069 = vmatpush1.msra.mxu0 0.0
  %1070 = vmatprep.subr.mxu0 0.0
  %1071 = vmatpush1.msra.mxu0 0.0
  %1072 = vmatprep.subr.mxu0 0.0
  %1073 = vmatpush1.msra.mxu0 0.0
  %1074 = vmatprep.subr.mxu0 0.0
  %1075 = vmatpush1.msra.mxu0 0.0
  %1076 = vmatprep.subr.mxu0 0.0
  %1077 = vmatpush1.msra.mxu0 0.0
  %1078 = vmatprep.subr.mxu0 0.0
  %1079 = vmatpush1.msra.mxu0 0.0
  %1080 = vmatprep.subr.mxu0 0.0
  %1081 = vmatpush1.msra.mxu0 0.0
  %1082 = vmatprep.subr.mxu0 0.0
  %1083 = vmatpush1.msra.mxu0 0.0
  %1084 = vmatprep.subr.mxu0 0.0
  %1085 = vmatpush1.msra.mxu0 0.0
  %1086 = vmatprep.subr.mxu0 0.0
  %1087 = vmatpush1.msra.mxu0 0.0
  %1088 = vmatprep.subr.mxu0 0.0
  %1089 = vmatpush1.msra.mxu0 0.0
  %1090 = vmatprep.subr.mxu0 0.0
  %1091 = vmatpush1.msra.mxu0 0.0
  %1092 = vmatprep.subr.mxu0 0.0
  %1093 = vmatpush1.msra.mxu0 %v1067
  %1094 = vmatprep.subr.mxu0 0.0
  %1095 = vmatpush1.msra.mxu0 %v1066
  %1096 = vmatprep.subr.mxu0 0.0
  %1097 = vmatpush1.msra.mxu0 %v1065
  %1098 = vmatprep.subr.mxu0 0.0
  %1099 = vmatpush1.msra.mxu0 %v1064
  %1100 = vmatprep.subr.mxu0 0.0
  %1101 = vmatpush2.msra.mxu0 0.0
  %1102 = vmatprep.subr.mxu0 0.0
  %1103 = vmatpush2.msra.mxu0 0.0
  %1104 = vmatprep.subr.mxu0 0.0
  %1105 = vmatpush2.msra.mxu0 0.0
  %1106 = vmatprep.subr.mxu0 0.0
  %1107 = vmatpush2.msra.mxu0 0.0
  %1108 = vmatprep.subr.mxu0 0.0
  %1109 = vmatpush2.msra.mxu0 0.0
  %1110 = vmatprep.subr.mxu0 0.0
  %1111 = vmatpush2.msra.mxu0 0.0
  %1112 = vmatprep.subr.mxu0 0.0
  %1113 = vmatpush2.msra.mxu0 0.0
  %1114 = vmatprep.subr.mxu0 0.0
  %1115 = vmatpush2.msra.mxu0 0.0
  %1116 = vmatprep.subr.mxu0 0.0
  %1117 = vmatpush2.msra.mxu0 0.0
  %1118 = vmatprep.subr.mxu0 0.0
  %1119 = vmatpush2.msra.mxu0 0.0
  %1120 = vmatprep.subr.mxu0 0.0
  %1121 = vmatpush2.msra.mxu0 0.0
  %1122 = vmatprep.subr.mxu0 0.0
  %1123 = vmatpush2.msra.mxu0 0.0
  %1124 = vmatprep.subr.mxu0 0.0
  %1125 = vmatpush2.msra.mxu0 0.0
  %1126 = vmatprep.subr.mxu0 0.0
  %1127 = vmatpush2.msra.mxu0 0.0
  %1128 = vmatprep.subr.mxu0 0.0
  %1129 = vmatpush2.msra.mxu0 0.0
  %1130 = vmatprep.subr.mxu0 0.0
  %1131 = vmatpush2.msra.mxu0 0.0
  %1132 = vmatprep.mubr.f32.mxu0 0.0
  %1133 = vmatmul.mubr.f32.gmra.mxu0 %v199
  %v1134 = vpop.f32.mrf.mxu0
  %v1135 = vadd.f32 %v152, %v1134
  %v1136 = vpop.f32.mrf.mxu0
  %1137 = vmatprep.mubr.f32.mxu0 0.0
  %1138 = vmatmul.mubr.f32.gmra.mxu0 %v202
  %v1139 = vpop.f32.mrf.mxu0
  %v1140 = vadd.f32 %v157, %v1139
  %v1141 = vpop.f32.mrf.mxu0
  %1142 = vdwg.mxu0
  %v1143 = vmax.f32 %v1135, 0.0
  %v1144 = vmax.f32 %v1140, 0.0
  %1145 = vmatprep.subr.mxu0 0.0
  %1146 = vmatpush1.msra.mxu0 0.0
  %1147 = vmatprep.subr.mxu0 0.0
  %1148 = vmatpush1.msra.mxu0 0.0
  %1149 = vmatprep.subr.mxu0 0.0
  %1150 = vmatpush1.msra.mxu0 0.0
  %1151 = vmatprep.subr.mxu0 0.0
  %1152 = vmatpush1.msra.mxu0 0.0
  %1153 = vmatprep.subr.mxu0 0.0
  %1154 = vmatpush1.msra.mxu0 0.0
  %1155 = vmatprep.subr.mxu0 0.0
  %1156 = vmatpush1.msra.mxu0 0.0
  %1157 = vmatprep.subr.mxu0 0.0
  %1158 = vmatpush1.msra.mxu0 0.0
  %1159 = vmatprep.subr.mxu0 0.0
  %1160 = vmatpush1.msra.mxu0 0.0
  %1161 = vmatprep.subr.mxu0 0.0
  %1162 = vmatpush1.msra.mxu0 0.0
  %1163 = vmatprep.subr.mxu0 0.0
  %1164 = vmatpush1.msra.mxu0 0.0
  %1165 = vmatprep.subr.mxu0 0.0
  %1166 = vmatpush1.msra.mxu0 0.0
  %1167 = vmatprep.subr.mxu0 0.0
  %1168 = vmatpush1.msra.mxu0 0.0
  %1169 = vmatprep.subr.mxu0 0.0
  %1170 = vmatpush1.msra.mxu0 0.0
  %1171 = vmatprep.subr.mxu0 0.0
  %1172 = vmatpush1.msra.mxu0 0.0
  %1173 = vmatprep.subr.mxu0 0.0
  %1174 = vmatpush1.msra.mxu0 %v1144
  %1175 = vmatprep.subr.mxu0 0.0
  %1176 = vmatpush1.msra.mxu0 %v1143
  %1177 = vmatprep.subr.mxu0 0.0
  %1178 = vmatpush2.msra.mxu0 0.0
  %1179 = vmatprep.subr.mxu0 0.0
  %1180 = vmatpush2.msra.mxu0 0.0
  %1181 = vmatprep.subr.mxu0 0.0
  %1182 = vmatpush2.msra.mxu0 0.0
  %1183 = vmatprep.subr.mxu0 0.0
  %1184 = vmatpush2.msra.mxu0 0.0
  %1185 = vmatprep.subr.mxu0 0.0
  %1186 = vmatpush2.msra.mxu0 0.0
  %1187 = vmatprep.subr.mxu0 0.0
  %1188 = vmatpush2.msra.mxu0 0.0
  %1189 = vmatprep.subr.mxu0 0.0
  %1190 = vmatpush2.msra.mxu0 0.0
  %1191 = vmatprep.subr.mxu0 0.0
  %1192 = vmatpush2.msra.mxu0 0.0
  %1193 = vmatprep.subr.mxu0 0.0
  %1194 = vmatpush2.msra.mxu0 0.0
  %1195 = vmatprep.subr.mxu0 0.0
  %1196 = vmatpush2.msra.mxu0 0.0
  %1197 = vmatprep.subr.mxu0 0.0
  %1198 = vmatpush2.msra.mxu0 0.0
  %1199 = vmatprep.subr.mxu0 0.0
  %1200 = vmatpush2.msra.mxu0 0.0
  %1201 = vmatprep.subr.mxu0 0.0
  %1202 = vmatpush2.msra.mxu0 0.0
  %1203 = vmatprep.subr.mxu0 0.0
  %1204 = vmatpush2.msra.mxu0 0.0
  %1205 = vmatprep.subr.mxu0 0.0
  %1206 = vmatpush2.msra.mxu0 0.0
  %1207 = vmatprep.subr.mxu0 0.0
  %1208 = vmatpush2.msra.mxu0 0.0
  %1209 = vmatprep.mubr.f32.mxu0 0.0
  %1210 = vmatmul.mubr.f32.gmra.mxu0 %v283
  %v1211 = vpop.f32.mrf.mxu0
  %v1212 = vadd.f32 %v163, %v1211
  %v1213 = vpop.f32.mrf.mxu0
  %1214 = vdwg.mxu0
  %1215 = vst [vmem:[%s7 + $0xf] sm:$0x7] %v1212
  %1216 = vset.pattern.permute.xlu0 6
  %1217 = vperm.xlu0 %1216, %v165
  %v1218 = vpop.permute.xlu0 %1217
  %1220 = vset.pattern.permute.xlu0 6
  %1221 = vperm.xlu0 %1220, %v166
  %v1222 = vpop.permute.xlu0 %1221
  %1224 = vset.pattern.permute.xlu0 6
  %1225 = vperm.xlu0 %1224, %v167
  %v1226 = vpop.permute.xlu0 %1225
  %1228 = vset.pattern.permute.xlu0 6
  %1229 = vperm.xlu0 %1228, %v168
  %v1230 = vpop.permute.xlu0 %1229
  %v1232 = vadd.f32 %v140, %v1218
  %v1233 = vadd.f32 %v141, %v1222
  %v1234 = vadd.f32 %v142, %v1226
  %v1235 = vadd.f32 %v143, %v1230
  %v1236 = vmax.f32 %v1232, 0.0
  %v1237 = vmax.f32 %v1233, 0.0
  %v1238 = vmax.f32 %v1234, 0.0
  %v1239 = vmax.f32 %v1235, 0.0
  %1240 = vmatprep.subr.mxu0 0.0
  %1241 = vmatpush1.msra.mxu0 0.0
  %1242 = vmatprep.subr.mxu0 0.0
  %1243 = vmatpush1.msra.mxu0 0.0
  %1244 = vmatprep.subr.mxu0 0.0
  %1245 = vmatpush1.msra.mxu0 0.0
  %1246 = vmatprep.subr.mxu0 0.0
  %1247 = vmatpush1.msra.mxu0 0.0
  %1248 = vmatprep.subr.mxu0 0.0
  %1249 = vmatpush1.msra.mxu0 0.0
  %1250 = vmatprep.subr.mxu0 0.0
  %1251 = vmatpush1.msra.mxu0 0.0
  %1252 = vmatprep.subr.mxu0 0.0
  %1253 = vmatpush1.msra.mxu0 0.0
  %1254 = vmatprep.subr.mxu0 0.0
  %1255 = vmatpush1.msra.mxu0 0.0
  %1256 = vmatprep.subr.mxu0 0.0
  %1257 = vmatpush1.msra.mxu0 0.0
  %1258 = vmatprep.subr.mxu0 0.0
  %1259 = vmatpush1.msra.mxu0 0.0
  %1260 = vmatprep.subr.mxu0 0.0
  %1261 = vmatpush1.msra.mxu0 0.0
  %1262 = vmatprep.subr.mxu0 0.0
  %1263 = vmatpush1.msra.mxu0 0.0
  %1264 = vmatprep.subr.mxu0 0.0
  %1265 = vmatpush1.msra.mxu0 %v1239
  %1266 = vmatprep.subr.mxu0 0.0
  %1267 = vmatpush1.msra.mxu0 %v1238
  %1268 = vmatprep.subr.mxu0 0.0
  %1269 = vmatpush1.msra.mxu0 %v1237
  %1270 = vmatprep.subr.mxu0 0.0
  %1271 = vmatpush1.msra.mxu0 %v1236
  %1272 = vmatprep.subr.mxu0 0.0
  %1273 = vmatpush2.msra.mxu0 0.0
  %1274 = vmatprep.subr.mxu0 0.0
  %1275 = vmatpush2.msra.mxu0 0.0
  %1276 = vmatprep.subr.mxu0 0.0
  %1277 = vmatpush2.msra.mxu0 0.0
  %1278 = vmatprep.subr.mxu0 0.0
  %1279 = vmatpush2.msra.mxu0 0.0
  %1280 = vmatprep.subr.mxu0 0.0
  %1281 = vmatpush2.msra.mxu0 0.0
  %1282 = vmatprep.subr.mxu0 0.0
  %1283 = vmatpush2.msra.mxu0 0.0
  %1284 = vmatprep.subr.mxu0 0.0
  %1285 = vmatpush2.msra.mxu0 0.0
  %1286 = vmatprep.subr.mxu0 0.0
  %1287 = vmatpush2.msra.mxu0 0.0
  %1288 = vmatprep.subr.mxu0 0.0
  %1289 = vmatpush2.msra.mxu0 0.0
  %1290 = vmatprep.subr.mxu0 0.0
  %1291 = vmatpush2.msra.mxu0 0.0
  %1292 = vmatprep.subr.mxu0 0.0
  %1293 = vmatpush2.msra.mxu0 0.0
  %1294 = vmatprep.subr.mxu0 0.0
  %1295 = vmatpush2.msra.mxu0 0.0
  %1296 = vmatprep.subr.mxu0 0.0
  %1297 = vmatpush2.msra.mxu0 0.0
  %1298 = vmatprep.subr.mxu0 0.0
  %1299 = vmatpush2.msra.mxu0 0.0
  %1300 = vmatprep.subr.mxu0 0.0
  %1301 = vmatpush2.msra.mxu0 0.0
  %1302 = vmatprep.subr.mxu0 0.0
  %1303 = vmatpush2.msra.mxu0 0.0
  %1304 = vmatprep.mubr.f32.mxu0 0.0
  %1305 = vmatmul.mubr.f32.gmra.mxu0 %v199
  %v1306 = vpop.f32.mrf.mxu0
  %v1307 = vadd.f32 %v152, %v1306
  %v1308 = vpop.f32.mrf.mxu0
  %1309 = vmatprep.mubr.f32.mxu0 0.0
  %1310 = vmatmul.mubr.f32.gmra.mxu0 %v202
  %v1311 = vpop.f32.mrf.mxu0
  %v1312 = vadd.f32 %v157, %v1311
  %v1313 = vpop.f32.mrf.mxu0
  %1314 = vdwg.mxu0
  %v1315 = vmax.f32 %v1307, 0.0
  %v1316 = vmax.f32 %v1312, 0.0
  %1317 = vmatprep.subr.mxu0 0.0
  %1318 = vmatpush1.msra.mxu0 0.0
  %1319 = vmatprep.subr.mxu0 0.0
  %1320 = vmatpush1.msra.mxu0 0.0
  %1321 = vmatprep.subr.mxu0 0.0
  %1322 = vmatpush1.msra.mxu0 0.0
  %1323 = vmatprep.subr.mxu0 0.0
  %1324 = vmatpush1.msra.mxu0 0.0
  %1325 = vmatprep.subr.mxu0 0.0
  %1326 = vmatpush1.msra.mxu0 0.0
  %1327 = vmatprep.subr.mxu0 0.0
  %1328 = vmatpush1.msra.mxu0 0.0
  %1329 = vmatprep.subr.mxu0 0.0
  %1330 = vmatpush1.msra.mxu0 0.0
  %1331 = vmatprep.subr.mxu0 0.0
  %1332 = vmatpush1.msra.mxu0 0.0
  %1333 = vmatprep.subr.mxu0 0.0
  %1334 = vmatpush1.msra.mxu0 0.0
  %1335 = vmatprep.subr.mxu0 0.0
  %1336 = vmatpush1.msra.mxu0 0.0
  %1337 = vmatprep.subr.mxu0 0.0
  %1338 = vmatpush1.msra.mxu0 0.0
  %1339 = vmatprep.subr.mxu0 0.0
  %1340 = vmatpush1.msra.mxu0 0.0
  %1341 = vmatprep.subr.mxu0 0.0
  %1342 = vmatpush1.msra.mxu0 0.0
  %1343 = vmatprep.subr.mxu0 0.0
  %1344 = vmatpush1.msra.mxu0 0.0
  %1345 = vmatprep.subr.mxu0 0.0
  %1346 = vmatpush1.msra.mxu0 %v1316
  %1347 = vmatprep.subr.mxu0 0.0
  %1348 = vmatpush1.msra.mxu0 %v1315
  %1349 = vmatprep.subr.mxu0 0.0
  %1350 = vmatpush2.msra.mxu0 0.0
  %1351 = vmatprep.subr.mxu0 0.0
  %1352 = vmatpush2.msra.mxu0 0.0
  %1353 = vmatprep.subr.mxu0 0.0
  %1354 = vmatpush2.msra.mxu0 0.0
  %1355 = vmatprep.subr.mxu0 0.0
  %1356 = vmatpush2.msra.mxu0 0.0
  %1357 = vmatprep.subr.mxu0 0.0
  %1358 = vmatpush2.msra.mxu0 0.0
  %1359 = vmatprep.subr.mxu0 0.0
  %1360 = vmatpush2.msra.mxu0 0.0
  %1361 = vmatprep.subr.mxu0 0.0
  %1362 = vmatpush2.msra.mxu0 0.0
  %1363 = vmatprep.subr.mxu0 0.0
  %1364 = vmatpush2.msra.mxu0 0.0
  %1365 = vmatprep.subr.mxu0 0.0
  %1366 = vmatpush2.msra.mxu0 0.0
  %1367 = vmatprep.subr.mxu0 0.0
  %1368 = vmatpush2.msra.mxu0 0.0
  %1369 = vmatprep.subr.mxu0 0.0
  %1370 = vmatpush2.msra.mxu0 0.0
  %1371 = vmatprep.subr.mxu0 0.0
  %1372 = vmatpush2.msra.mxu0 0.0
  %1373 = vmatprep.subr.mxu0 0.0
  %1374 = vmatpush2.msra.mxu0 0.0
  %1375 = vmatprep.subr.mxu0 0.0
  %1376 = vmatpush2.msra.mxu0 0.0
  %1377 = vmatprep.subr.mxu0 0.0
  %1378 = vmatpush2.msra.mxu0 0.0
  %1379 = vmatprep.subr.mxu0 0.0
  %1380 = vmatpush2.msra.mxu0 0.0
  %1381 = vmatprep.mubr.f32.mxu0 0.0
  %1382 = vmatmul.mubr.f32.gmra.mxu0 %v283
  %v1383 = vpop.f32.mrf.mxu0
  %v1384 = vadd.f32 %v163, %v1383
  %v1385 = vpop.f32.mrf.mxu0
  %1386 = vdwg.mxu0
  %1387 = vst [vmem:[%s7 + $0x12] sm:$0x7] %v1384
  %1388 = vset.pattern.permute.xlu0 7
  %1389 = vperm.xlu0 %1388, %v165
  %v1390 = vpop.permute.xlu0 %1389
  %1392 = vset.pattern.permute.xlu0 7
  %1393 = vperm.xlu0 %1392, %v166
  %v1394 = vpop.permute.xlu0 %1393
  %1396 = vset.pattern.permute.xlu0 7
  %1397 = vperm.xlu0 %1396, %v167
  %v1398 = vpop.permute.xlu0 %1397
  %1400 = vset.pattern.permute.xlu0 7
  %1401 = vperm.xlu0 %1400, %v168
  %v1402 = vpop.permute.xlu0 %1401
  %v1404 = vadd.f32 %v140, %v1390
  %v1405 = vadd.f32 %v141, %v1394
  %v1406 = vadd.f32 %v142, %v1398
  %v1407 = vadd.f32 %v143, %v1402
  %v1408 = vmax.f32 %v1404, 0.0
  %v1409 = vmax.f32 %v1405, 0.0
  %v1410 = vmax.f32 %v1406, 0.0
  %v1411 = vmax.f32 %v1407, 0.0
  %1412 = vmatprep.subr.mxu0 0.0
  %1413 = vmatpush1.msra.mxu0 0.0
  %1414 = vmatprep.subr.mxu0 0.0
  %1415 = vmatpush1.msra.mxu0 0.0
  %1416 = vmatprep.subr.mxu0 0.0
  %1417 = vmatpush1.msra.mxu0 0.0
  %1418 = vmatprep.subr.mxu0 0.0
  %1419 = vmatpush1.msra.mxu0 0.0
  %1420 = vmatprep.subr.mxu0 0.0
  %1421 = vmatpush1.msra.mxu0 0.0
  %1422 = vmatprep.subr.mxu0 0.0
  %1423 = vmatpush1.msra.mxu0 0.0
  %1424 = vmatprep.subr.mxu0 0.0
  %1425 = vmatpush1.msra.mxu0 0.0
  %1426 = vmatprep.subr.mxu0 0.0
  %1427 = vmatpush1.msra.mxu0 0.0
  %1428 = vmatprep.subr.mxu0 0.0
  %1429 = vmatpush1.msra.mxu0 0.0
  %1430 = vmatprep.subr.mxu0 0.0
  %1431 = vmatpush1.msra.mxu0 0.0
  %1432 = vmatprep.subr.mxu0 0.0
  %1433 = vmatpush1.msra.mxu0 0.0
  %1434 = vmatprep.subr.mxu0 0.0
  %1435 = vmatpush1.msra.mxu0 0.0
  %1436 = vmatprep.subr.mxu0 0.0
  %1437 = vmatpush1.msra.mxu0 %v1411
  %1438 = vmatprep.subr.mxu0 0.0
  %1439 = vmatpush1.msra.mxu0 %v1410
  %1440 = vmatprep.subr.mxu0 0.0
  %1441 = vmatpush1.msra.mxu0 %v1409
  %1442 = vmatprep.subr.mxu0 0.0
  %1443 = vmatpush1.msra.mxu0 %v1408
  %1444 = vmatprep.subr.mxu0 0.0
  %1445 = vmatpush2.msra.mxu0 0.0
  %1446 = vmatprep.subr.mxu0 0.0
  %1447 = vmatpush2.msra.mxu0 0.0
  %1448 = vmatprep.subr.mxu0 0.0
  %1449 = vmatpush2.msra.mxu0 0.0
  %1450 = vmatprep.subr.mxu0 0.0
  %1451 = vmatpush2.msra.mxu0 0.0
  %1452 = vmatprep.subr.mxu0 0.0
  %1453 = vmatpush2.msra.mxu0 0.0
  %1454 = vmatprep.subr.mxu0 0.0
  %1455 = vmatpush2.msra.mxu0 0.0
  %1456 = vmatprep.subr.mxu0 0.0
  %1457 = vmatpush2.msra.mxu0 0.0
  %1458 = vmatprep.subr.mxu0 0.0
  %1459 = vmatpush2.msra.mxu0 0.0
  %1460 = vmatprep.subr.mxu0 0.0
  %1461 = vmatpush2.msra.mxu0 0.0
  %1462 = vmatprep.subr.mxu0 0.0
  %1463 = vmatpush2.msra.mxu0 0.0
  %1464 = vmatprep.subr.mxu0 0.0
  %1465 = vmatpush2.msra.mxu0 0.0
  %1466 = vmatprep.subr.mxu0 0.0
  %1467 = vmatpush2.msra.mxu0 0.0
  %1468 = vmatprep.subr.mxu0 0.0
  %1469 = vmatpush2.msra.mxu0 0.0
  %1470 = vmatprep.subr.mxu0 0.0
  %1471 = vmatpush2.msra.mxu0 0.0
  %1472 = vmatprep.subr.mxu0 0.0
  %1473 = vmatpush2.msra.mxu0 0.0
  %1474 = vmatprep.subr.mxu0 0.0
  %1475 = vmatpush2.msra.mxu0 0.0
  %1476 = vmatprep.mubr.f32.mxu0 0.0
  %1477 = vmatmul.mubr.f32.gmra.mxu0 %v199
  %v1478 = vpop.f32.mrf.mxu0
  %v1479 = vadd.f32 %v152, %v1478
  %v1480 = vpop.f32.mrf.mxu0
  %1481 = vmatprep.mubr.f32.mxu0 0.0
  %1482 = vmatmul.mubr.f32.gmra.mxu0 %v202
  %v1483 = vpop.f32.mrf.mxu0
  %v1484 = vadd.f32 %v157, %v1483
  %v1485 = vpop.f32.mrf.mxu0
  %1486 = vdwg.mxu0
  %v1487 = vmax.f32 %v1479, 0.0
  %v1488 = vmax.f32 %v1484, 0.0
  %1489 = vmatprep.subr.mxu0 0.0
  %1490 = vmatpush1.msra.mxu0 0.0
  %1491 = vmatprep.subr.mxu0 0.0
  %1492 = vmatpush1.msra.mxu0 0.0
  %1493 = vmatprep.subr.mxu0 0.0
  %1494 = vmatpush1.msra.mxu0 0.0
  %1495 = vmatprep.subr.mxu0 0.0
  %1496 = vmatpush1.msra.mxu0 0.0
  %1497 = vmatprep.subr.mxu0 0.0
  %1498 = vmatpush1.msra.mxu0 0.0
  %1499 = vmatprep.subr.mxu0 0.0
  %1500 = vmatpush1.msra.mxu0 0.0
  %1501 = vmatprep.subr.mxu0 0.0
  %1502 = vmatpush1.msra.mxu0 0.0
  %1503 = vmatprep.subr.mxu0 0.0
  %1504 = vmatpush1.msra.mxu0 0.0
  %1505 = vmatprep.subr.mxu0 0.0
  %1506 = vmatpush1.msra.mxu0 0.0
  %1507 = vmatprep.subr.mxu0 0.0
  %1508 = vmatpush1.msra.mxu0 0.0
  %1509 = vmatprep.subr.mxu0 0.0
  %1510 = vmatpush1.msra.mxu0 0.0
  %1511 = vmatprep.subr.mxu0 0.0
  %1512 = vmatpush1.msra.mxu0 0.0
  %1513 = vmatprep.subr.mxu0 0.0
  %1514 = vmatpush1.msra.mxu0 0.0
  %1515 = vmatprep.subr.mxu0 0.0
  %1516 = vmatpush1.msra.mxu0 0.0
  %1517 = vmatprep.subr.mxu0 0.0
  %1518 = vmatpush1.msra.mxu0 %v1488
  %1519 = vmatprep.subr.mxu0 0.0
  %1520 = vmatpush1.msra.mxu0 %v1487
  %1521 = vmatprep.subr.mxu0 0.0
  %1522 = vmatpush2.msra.mxu0 0.0
  %1523 = vmatprep.subr.mxu0 0.0
  %1524 = vmatpush2.msra.mxu0 0.0
  %1525 = vmatprep.subr.mxu0 0.0
  %1526 = vmatpush2.msra.mxu0 0.0
  %1527 = vmatprep.subr.mxu0 0.0
  %1528 = vmatpush2.msra.mxu0 0.0
  %1529 = vmatprep.subr.mxu0 0.0
  %1530 = vmatpush2.msra.mxu0 0.0
  %1531 = vmatprep.subr.mxu0 0.0
  %1532 = vmatpush2.msra.mxu0 0.0
  %1533 = vmatprep.subr.mxu0 0.0
  %1534 = vmatpush2.msra.mxu0 0.0
  %1535 = vmatprep.subr.mxu0 0.0
  %1536 = vmatpush2.msra.mxu0 0.0
  %1537 = vmatprep.subr.mxu0 0.0
  %1538 = vmatpush2.msra.mxu0 0.0
  %1539 = vmatprep.subr.mxu0 0.0
  %1540 = vmatpush2.msra.mxu0 0.0
  %1541 = vmatprep.subr.mxu0 0.0
  %1542 = vmatpush2.msra.mxu0 0.0
  %1543 = vmatprep.subr.mxu0 0.0
  %1544 = vmatpush2.msra.mxu0 0.0
  %1545 = vmatprep.subr.mxu0 0.0
  %1546 = vmatpush2.msra.mxu0 0.0
  %1547 = vmatprep.subr.mxu0 0.0
  %1548 = vmatpush2.msra.mxu0 0.0
  %1549 = vmatprep.subr.mxu0 0.0
  %1550 = vmatpush2.msra.mxu0 0.0
  %1551 = vmatprep.subr.mxu0 0.0
  %1552 = vmatpush2.msra.mxu0 0.0
  %1553 = vmatprep.mubr.f32.mxu0 0.0
  %1554 = vmatmul.mubr.f32.gmra.mxu0 %v283
  %v1555 = vpop.f32.mrf.mxu0
  %v1556 = vadd.f32 %v163, %v1555
  %v1557 = vpop.f32.mrf.mxu0
  %1558 = vdwg.mxu0
  %1559 = vst [vmem:[%s7 + $0x15] sm:$0x7] %v1556
  // Predicated region
  $region34: #{decode_mlp_pallas.1} parent=0 // pred_check
    _
  $region35: #{decode_mlp_pallas.1} parent=0 // pred_check_branch
    %1561 = sbr.rel (0) target = $region37
  $region36: #{decode_mlp_pallas.1} parent=0 // pred_region
    _
  $region37: #{decode_mlp_pallas.1} parent=0 // pred_fallthru
    _
  // Predicated region
  $region38: #{decode_mlp_pallas.1} parent=0 // pred_check
    _
  $region39: #{decode_mlp_pallas.1} parent=0 // pred_check_branch
    %1563 = sbr.rel (0) target = $region41
  $region40: #{decode_mlp_pallas.1} parent=0 // pred_region
    _
  $region41: #{decode_mlp_pallas.1} parent=0 // pred_fallthru
    _

</llo_original>
